<compile_context>
chip_gen: v7x
topology: tpu7x:2x2x1
jax: 0.10.0
libtpu: 0.0.40
codegen_flags: <defaults>
</compile_context>

<pallas_src>
import functools

import numpy as np
import jax
import jax.numpy as jnp
from jax import lax
from jax.experimental import pallas as pl
from jax.experimental.pallas import tpu as pltpu

K = 7        # spatial-attention conv kernel size
DIL = 3      # dilation
PAD = 9      # padding -> "same" output spatial size
NTAP = 2 * K * K                    # 98 im2col rows (avg/max interleaved per tap)
NTAP_PAD = ((NTAP + 7) // 8) * 8    # 104, sublane-aligned patch-matrix height


def hscam_kernel(W, LEFT,
                 x_ref,                               # (1, C, HW)
                 mask_ref,                            # (NTAP_PAD, HW) host-built 0/1 wrap mask
                 w1t_ref, b1c_ref, w2t_ref, b2c_ref,  # shared MLP (transposed)
                 wsp_ref, bsc_ref,                    # spatial conv: (C, NTAP_PAD), (C, 1)
                 wc1t_ref, wc2t_ref, bcc_ref,         # 1x1 fuse conv (transposed)
                 o_ref,                               # (1, C, HW)
                 padflat_ref,                         # (2, LP) VMEM: flattened padded {avg,max}
                 patches_ref):                        # (NTAP_PAD, HW) VMEM: im2col matrix
    x = x_ref[0]                                      # (C, HW) f32
    C, HW = x.shape

    # ---------------- channel attention (global avg/max pool + shared MLP) ------
    avg_c = jnp.mean(x, axis=1, keepdims=True)        # (C, 1)
    max_c = jnp.max(x, axis=1, keepdims=True)         # (C, 1)
    # [avg | max] as two columns -> one MLP pass with N=2 instead of two N=1 passes
    col = lax.broadcasted_iota(jnp.int32, (1, 2), 1)
    pools = jnp.where(col == 0, avg_c, max_c)         # (C, 2)
    h = jnp.maximum(
        jnp.dot(w1t_ref[...], pools, preferred_element_type=jnp.float32) + b1c_ref[...],
        0.0)                                          # (MID, 2)
    mo = jnp.dot(w2t_ref[...], h, preferred_element_type=jnp.float32) + b2c_ref[...]  # (C, 2)
    ca = jax.nn.sigmoid(jnp.sum(mo, axis=1, keepdims=True))   # (C, 1) -- "outc" as a column
    # outc contribution to the 1x1 fuse conv is spatially constant -> one matvec,
    # issued here so all the tiny MXU ops run back-to-back before the big conv.
    term_c = jnp.dot(wc1t_ref[...], ca, preferred_element_type=jnp.float32)   # (C, 1)

    # ---------------- spatial attention: channel mean/max -> im2col -> MXU ------
    avg_s = jnp.mean(x, axis=0, keepdims=True)        # (1, HW)
    max_s = jnp.max(x, axis=0, keepdims=True)         # (1, HW)

    # Flattened, vertically zero-padded image: pixel (h, w) lives at lane
    # LEFT + (h + PAD)*W + w.  LEFT is chosen so the interior starts on a
    # 128-lane boundary.  Only the halo is zeroed (re-done every step so the
    # "parallel" batch scheduling across TensorCores stays correct); the
    # interior is written with a single lane-aligned (2, HW) store.
    istart = LEFT + PAD * W
    lp = padflat_ref.shape[1]
    padflat_ref[:, 0:istart] = jnp.zeros((2, istart), jnp.float32)
    padflat_ref[:, istart + HW:lp] = jnp.zeros((2, lp - istart - HW), jnp.float32)
    ridx = lax.broadcasted_iota(jnp.int32, (2, 1), 0)
    padflat_ref[:, istart:istart + HW] = jnp.where(ridx == 0, avg_s, max_s)   # (2, HW)

    # im2col in aligned 8-row groups: 4 taps ({avg,max} rows each) are
    # concatenated into one (8, HW) block, multiplied by the precomputed
    # wrap/pad mask, and written with one unmasked full-tile store.
    n_groups = NTAP_PAD // 8
    for g in range(n_groups):
        parts = []
        for t in range(4):
            # padding rows (k >= 49) just reuse the last tap slice; the mask is
            # 0.0 there, and padflat is fully initialised, so the product is
            # exactly zero (keeps the load-bearing zeroing of rows >= NTAP).
            k = min(4 * g + t, K * K - 1)
            kh, kw = divmod(k, K)
            base = LEFT + (DIL * kh) * W + (DIL * kw - PAD)
            parts.append(padflat_ref[:, base:base + HW])      # (2, HW) {avg,max}
        block = jnp.concatenate(parts, axis=0)                # (8, HW)
        patches_ref[8 * g:8 * g + 8, :] = block * mask_ref[8 * g:8 * g + 8, :]

    # whole 7x7 dilated conv as one MXU matmul: (C, 104) @ (104, HW)
    conv = jnp.dot(wsp_ref[...], patches_ref[...],
                   preferred_element_type=jnp.float32)        # (C, HW)
    outs = jax.nn.sigmoid(conv + bsc_ref[...])                # (C, HW)

    # ---------------- 1x1 conv over concat([outc, outs]) + sigmoid --------------
    term_s = jnp.dot(wc2t_ref[...], outs, preferred_element_type=jnp.float32)  # (C, HW)
    mix = jax.nn.sigmoid(term_s + term_c + bcc_ref[...])

    # ---------------- gate + residual (ca broadcast implicitly) -----------------
    o_ref[0] = mix * ca * outs + x


def hscam_block(x, p):
    B, H, W, C = x.shape
    HW = H * W
    MID = p["w1"].shape[1]

    # lane-dense layout: spatial on lanes (HW), channels on sublanes
    xt = x.transpose(0, 3, 1, 2).reshape(B, C, HW)

    # kernel-side parameter layouts (transposed / interleaved once, outside)
    w1t = p["w1"].T                                   # (MID, C)
    b1c = p["b1"].T                                   # (MID, 1)
    w2t = p["w2"].T                                   # (C, MID)
    b2c = p["b2"].T                                   # (C, 1)
    # interleave avg/max taps to match the patch-matrix row order, pad K-dim
    wk = jnp.stack([p["wa"], p["wm"]], axis=1).reshape(NTAP, C)   # rows: a0,m0,a1,m1,...
    wsp = jnp.concatenate(
        [wk.T, jnp.zeros((C, NTAP_PAD - NTAP), jnp.float32)], axis=1)  # (C, NTAP_PAD)
    bsc = p["bs"].T                                   # (C, 1)
    wc1t = p["wc1"].T                                 # (C, C)
    wc2t = p["wc2"].T                                 # (C, C)
    bcc = p["bc"].T                                   # (C, 1)

    # host-precomputed horizontal wrap mask (+ zero for the pad rows >= NTAP)
    wcol = np.arange(HW) % W
    mask_np = np.zeros((NTAP_PAD, HW), np.float32)
    for k in range(K * K):
        dw = DIL * (k % K) - PAD
        valid = ((wcol + dw >= 0) & (wcol + dw < W)).astype(np.float32)
        mask_np[2 * k] = valid
        mask_np[2 * k + 1] = valid
    taps_mask = jnp.asarray(mask_np)                  # (NTAP_PAD, HW)

    # flattened / vertically-padded image geometry (static):
    #   LEFT >= PAD so every tap slice start is >= 0, and the interior starts
    #   on a 128-lane boundary.
    left = PAD + ((-(PAD + PAD * W)) % 128)
    lp = left + 2 * PAD * W + PAD + HW                # max tap-slice end
    lp = ((lp + 127) // 128) * 128

    def rep(shape):
        n = len(shape)
        return pl.BlockSpec(shape, lambda b, _n=n: (0,) * _n)

    # explicit scoped-VMEM sizing (double-buffered x/out + replicated weights +
    # scratch), clamped to a range that is safe on v5e/v6e/v7x.
    blk = C * HW * 4
    weight_bytes = 4 * int(taps_mask.size + w1t.size + b1c.size + w2t.size + b2c.size
                           + wsp.size + bsc.size + wc1t.size + wc2t.size + bcc.size)
    scratch_bytes = 4 * (2 * lp + NTAP_PAD * HW)
    est = 4 * blk + 2 * weight_bytes + scratch_bytes + (2 << 20)
    vmem_limit = int(min(max(est, 32 * 1024 * 1024), 48 * 1024 * 1024))

    out_t = pl.pallas_call(
        functools.partial(hscam_kernel, W, left),
        out_shape=jax.ShapeDtypeStruct((B, C, HW), jnp.float32),
        grid_spec=pltpu.PrefetchScalarGridSpec(
            num_scalar_prefetch=0,
            grid=(B,),
            in_specs=[
                pl.BlockSpec((1, C, HW), lambda b: (b, 0, 0)),
                rep((NTAP_PAD, HW)),
                rep((MID, C)), rep((MID, 1)), rep((C, MID)), rep((C, 1)),
                rep((C, NTAP_PAD)), rep((C, 1)),
                rep((C, C)), rep((C, C)), rep((C, 1)),
            ],
            out_specs=pl.BlockSpec((1, C, HW), lambda b: (b, 0, 0)),
            scratch_shapes=[
                pltpu.VMEM((2, lp), jnp.float32),          # flattened padded avg/max maps
                pltpu.VMEM((NTAP_PAD, HW), jnp.float32),   # im2col patch matrix
            ],
        ),
        # batch steps are independent -> let v7x's two TensorCores split them
        compiler_params=pltpu.CompilerParams(
            dimension_semantics=("parallel",),
            vmem_limit_bytes=vmem_limit),
    )(xt, taps_mask, w1t, b1c, w2t, b2c, wsp, bsc, wc1t, wc2t, bcc)

    # TODO(synk): at production shapes (H=W=128, C=256) add a spatial row-band
    # grid axis (TILE_H + 2*PAD halo, pl.Buffered(3) on x) so blocks fit v7x's
    # 64 MiB VMEM, and keep activations in (B, C, HW) across the surrounding
    # network so these two full-tensor wrapper transposes disappear.
    return out_t.reshape(B, C, H, W).transpose(0, 2, 3, 1)


def reference(x, p):
    """Pure-JAX re-implementation of HSCAMBlock.forward (NHWC I/O)."""
    B, H, W, C = x.shape
    avg_c = jnp.mean(x, axis=(1, 2))
    max_c = jnp.max(x, axis=(1, 2))

    def mlp(v):
        return jnp.maximum(v @ p["w1"] + p["b1"], 0.0) @ p["w2"] + p["b2"]

    ca = jax.nn.sigmoid(mlp(avg_c) + mlp(max_c))                  # (B, C)
    outc = jnp.broadcast_to(ca[:, None, None, :], x.shape)

    sa_in = jnp.stack([jnp.mean(x, -1), jnp.max(x, -1)], axis=-1)  # (B, H, W, 2)
    kern = jnp.stack([p["wa"].reshape(K, K, C),
                      p["wm"].reshape(K, K, C)], axis=2)           # (K, K, 2, C)
    conv = lax.conv_general_dilated(
        sa_in, kern, window_strides=(1, 1),
        padding=[(PAD, PAD), (PAD, PAD)], rhs_dilation=(DIL, DIL),
        dimension_numbers=("NHWC", "HWIO", "NHWC"))
    outs = jax.nn.sigmoid(conv + p["bs"][0])

    mix = jax.nn.sigmoid(jnp.einsum("bhwc,cd->bhwd", outc, p["wc1"]) +
                         jnp.einsum("bhwc,cd->bhwd", outs, p["wc2"]) + p["bc"][0])
    return mix * outc * outs + x


if __name__ == "__main__":
    B, H, W, C = 2, 16, 16, 32          # hidden_size=32 -> MLP mid = 32//16 = 2
    MID = C // 16

    key = jax.random.PRNGKey(0)
    ks = jax.random.split(key, 11)
    s = 0.1
    x = jax.random.normal(ks[0], (B, H, W, C), jnp.float32)
    params = {
        "w1":  (s * jax.random.normal(ks[1], (C, MID))).astype(jnp.float32),
        "b1":  (s * jax.random.normal(ks[2], (1, MID))).astype(jnp.float32),
        "w2":  (s * jax.random.normal(ks[3], (MID, C))).astype(jnp.float32),
        "b2":  (s * jax.random.normal(ks[4], (1, C))).astype(jnp.float32),
        "wa":  (s * jax.random.normal(ks[5], (K * K, C))).astype(jnp.float32),
        "wm":  (s * jax.random.normal(ks[6], (K * K, C))).astype(jnp.float32),
        "bs":  (s * jax.random.normal(ks[7], (1, C))).astype(jnp.float32),
        "wc1": (s * jax.random.normal(ks[8], (C, C))).astype(jnp.float32),
        "wc2": (s * jax.random.normal(ks[9], (C, C))).astype(jnp.float32),
        "bc":  (s * jax.random.normal(ks[10], (1, C))).astype(jnp.float32),
    }

    out = jax.block_until_ready(hscam_block(x, params))
    ref = jax.block_until_ready(reference(x, params))

    assert out.shape == (B, H, W, C), out.shape
    max_err = float(jnp.max(jnp.abs(out - ref)))
    assert max_err < 1e-3, f"mismatch vs reference: {max_err}"
    print("KERNEL_OK")
</pallas_src>

<mosaic_0001>
module attributes {stable_mosaic.version = 11 : i64} {
  func.func @hscam_kernel(%arg0: i32, %arg1: memref<1x32x256xf32, #tpu.memory_space<vmem>>, %arg2: memref<104x256xf32, #tpu.memory_space<vmem>>, %arg3: memref<2x32xf32, #tpu.memory_space<vmem>>, %arg4: memref<2x1xf32, #tpu.memory_space<vmem>>, %arg5: memref<32x2xf32, #tpu.memory_space<vmem>>, %arg6: memref<32x1xf32, #tpu.memory_space<vmem>>, %arg7: memref<32x104xf32, #tpu.memory_space<vmem>>, %arg8: memref<32x1xf32, #tpu.memory_space<vmem>>, %arg9: memref<32x32xf32, #tpu.memory_space<vmem>>, %arg10: memref<32x32xf32, #tpu.memory_space<vmem>>, %arg11: memref<32x1xf32, #tpu.memory_space<vmem>>, %arg12: memref<1x32x256xf32, #tpu.memory_space<vmem>>, %arg13: memref<2x768xf32, #tpu.memory_space<vmem>>, %arg14: memref<104x256xf32, #tpu.memory_space<vmem>>) attributes {dimension_semantics = [#tpu.dimension_semantics<parallel>], iteration_bounds = array<i64: 2>, scalar_prefetch = 0 : i64, scratch_operands = 2 : i64, tpu.core_type = #tpu.core_type<tc>, window_params = [{transform_indices = @transform_0, window_bounds = array<i64: 1, 32, 256>}, {pipeline_mode = #tpu.pipeline_mode<synchronous>, transform_indices = @transform_1, window_bounds = array<i64: 104, 256>}, {pipeline_mode = #tpu.pipeline_mode<synchronous>, transform_indices = @transform_2, window_bounds = array<i64: 2, 32>}, {pipeline_mode = #tpu.pipeline_mode<synchronous>, transform_indices = @transform_3, window_bounds = array<i64: 2, 1>}, {pipeline_mode = #tpu.pipeline_mode<synchronous>, transform_indices = @transform_4, window_bounds = array<i64: 32, 2>}, {pipeline_mode = #tpu.pipeline_mode<synchronous>, transform_indices = @transform_5, window_bounds = array<i64: 32, 1>}, {pipeline_mode = #tpu.pipeline_mode<synchronous>, transform_indices = @transform_6, window_bounds = array<i64: 32, 104>}, {pipeline_mode = #tpu.pipeline_mode<synchronous>, transform_indices = @transform_7, window_bounds = array<i64: 32, 1>}, {pipeline_mode = #tpu.pipeline_mode<synchronous>, transform_indices = @transform_8, window_bounds = array<i64: 32, 32>}, {pipeline_mode = #tpu.pipeline_mode<synchronous>, transform_indices = @transform_9, window_bounds = array<i64: 32, 32>}, {pipeline_mode = #tpu.pipeline_mode<synchronous>, transform_indices = @transform_10, window_bounds = array<i64: 32, 1>}, {transform_indices = @transform_11, window_bounds = array<i64: 1, 32, 256>}]} {
    %c0 = arith.constant 0 : index
    %c0_0 = arith.constant 0 : index
    %c0_1 = arith.constant 0 : index
    %0 = vector.load %arg1[%c0, %c0_0, %c0_1] : memref<1x32x256xf32, #tpu.memory_space<vmem>>, vector<1x32x256xf32>
    %1 = vector.shape_cast %0 : vector<1x32x256xf32> to vector<32x256xf32>
    %cst = arith.constant dense<0.000000e+00> : vector<32xf32>
    %2 = vector.multi_reduction <add>, %1, %cst [1] : vector<32x256xf32> to vector<32xf32>
    %3 = vector.shape_cast %2 : vector<32xf32> to vector<32x1xf32>
    %cst_2 = arith.constant 2.560000e+02 : f32
    %4 = vector.broadcast %cst_2 : f32 to vector<32x1xf32>
    %5 = arith.divf %3, %4 : vector<32x1xf32>
    %cst_3 = arith.constant dense<0xFF800000> : vector<32xf32>
    %6 = vector.multi_reduction <maximumf>, %1, %cst_3 [1] : vector<32x256xf32> to vector<32xf32>
    %7 = vector.shape_cast %6 : vector<32xf32> to vector<32x1xf32>
    %8 = tpu.iota {dimensions = array<i32: 1>} : vector<1x2xi32>
    %c0_i32 = arith.constant 0 : i32
    %9 = vector.broadcast %c0_i32 : i32 to vector<1x2xi32>
    %10 = arith.cmpi eq, %8, %9 : vector<1x2xi32>
    %11 = vector.shape_cast %10 : vector<1x2xi1> to vector<1x2xi1>
    %12 = vector.broadcast %11 : vector<1x2xi1> to vector<32x2xi1>
    %13 = vector.shape_cast %5 : vector<32x1xf32> to vector<32x1xf32>
    %14 = vector.broadcast %13 : vector<32x1xf32> to vector<32x2xf32>
    %15 = vector.shape_cast %7 : vector<32x1xf32> to vector<32x1xf32>
    %16 = vector.broadcast %15 : vector<32x1xf32> to vector<32x2xf32>
    %17 = arith.select %12, %14, %16 : vector<32x2xi1>, vector<32x2xf32>
    %c0_4 = arith.constant 0 : index
    %c0_5 = arith.constant 0 : index
    %18 = vector.load %arg3[%c0_4, %c0_5] : memref<2x32xf32, #tpu.memory_space<vmem>>, vector<2x32xf32>
    %cst_6 = arith.constant dense<0.000000e+00> : vector<2x2xf32>
    %19 = tpu.matmul %18, %17, %cst_6 {dimension_numbers = #tpu.dot_dimension_numbers<[1], [0], [0], [1], [0, 0, 1, 1], [], []>} : vector<2x32xf32>, vector<32x2xf32>, vector<2x2xf32> -> vector<2x2xf32>
    %c0_7 = arith.constant 0 : index
    %c0_8 = arith.constant 0 : index
    %20 = vector.load %arg4[%c0_7, %c0_8] : memref<2x1xf32, #tpu.memory_space<vmem>>, vector<2x1xf32>
    %21 = vector.broadcast %20 : vector<2x1xf32> to vector<2x2xf32>
    %22 = arith.addf %19, %21 : vector<2x2xf32>
    %cst_9 = arith.constant 0.000000e+00 : f32
    %23 = vector.broadcast %cst_9 : f32 to vector<2x2xf32>
    %24 = arith.maximumf %22, %23 : vector<2x2xf32>
    %c0_10 = arith.constant 0 : index
    %c0_11 = arith.constant 0 : index
    %25 = vector.load %arg5[%c0_10, %c0_11] : memref<32x2xf32, #tpu.memory_space<vmem>>, vector<32x2xf32>
    %cst_12 = arith.constant dense<0.000000e+00> : vector<32x2xf32>
    %26 = tpu.matmul %25, %24, %cst_12 {dimension_numbers = #tpu.dot_dimension_numbers<[1], [0], [0], [1], [0, 0, 1, 1], [], []>} : vector<32x2xf32>, vector<2x2xf32>, vector<32x2xf32> -> vector<32x2xf32>
    %c0_13 = arith.constant 0 : index
    %c0_14 = arith.constant 0 : index
    %27 = vector.load %arg6[%c0_13, %c0_14] : memref<32x1xf32, #tpu.memory_space<vmem>>, vector<32x1xf32>
    %28 = vector.broadcast %27 : vector<32x1xf32> to vector<32x2xf32>
    %29 = arith.addf %26, %28 : vector<32x2xf32>
    %cst_15 = arith.constant dense<0.000000e+00> : vector<32xf32>
    %30 = vector.multi_reduction <add>, %29, %cst_15 [1] : vector<32x2xf32> to vector<32xf32>
    %31 = vector.shape_cast %30 : vector<32xf32> to vector<32x1xf32>
    %32 = arith.negf %31 : vector<32x1xf32>
    %33 = math.exp %32 : vector<32x1xf32>
    %cst_16 = arith.constant 1.000000e+00 : f32
    %34 = vector.broadcast %cst_16 : f32 to vector<32x1xf32>
    %35 = arith.addf %34, %33 : vector<32x1xf32>
    %36 = arith.divf %34, %35 : vector<32x1xf32>
    %c0_17 = arith.constant 0 : index
    %c0_18 = arith.constant 0 : index
    %37 = vector.load %arg9[%c0_17, %c0_18] : memref<32x32xf32, #tpu.memory_space<vmem>>, vector<32x32xf32>
    %cst_19 = arith.constant dense<0.000000e+00> : vector<32x1xf32>
    %38 = tpu.matmul %37, %36, %cst_19 {dimension_numbers = #tpu.dot_dimension_numbers<[1], [0], [0], [1], [0, 0, 1, 1], [], []>} : vector<32x32xf32>, vector<32x1xf32>, vector<32x1xf32> -> vector<32x1xf32>
    %cst_20 = arith.constant dense<0.000000e+00> : vector<256xf32>
    %39 = vector.multi_reduction <add>, %1, %cst_20 [0] : vector<32x256xf32> to vector<256xf32>
    %40 = vector.shape_cast %39 : vector<256xf32> to vector<1x256xf32>
    %cst_21 = arith.constant 3.200000e+01 : f32
    %41 = vector.broadcast %cst_21 : f32 to vector<1x256xf32>
    %42 = arith.divf %40, %41 : vector<1x256xf32>
    %cst_22 = arith.constant dense<0xFF800000> : vector<256xf32>
    %43 = vector.multi_reduction <maximumf>, %1, %cst_22 [0] : vector<32x256xf32> to vector<256xf32>
    %44 = vector.shape_cast %43 : vector<256xf32> to vector<1x256xf32>
    %cst_23 = arith.constant 0.000000e+00 : f32
    %45 = vector.broadcast %cst_23 : f32 to vector<2x256xf32>
    %c0_24 = arith.constant 0 : index
    %c0_25 = arith.constant 0 : index
    %46 = vector.load %arg13[%c0_24, %c0_25] : memref<2x768xf32, #tpu.memory_space<vmem>>, vector<2x256xf32>
    tpu.vector_store %arg13[%c0_24, %c0_25], %45 {strides = array<i32>} : memref<2x768xf32, #tpu.memory_space<vmem>>, vector<2x256xf32>,
    %cst_26 = arith.constant 0.000000e+00 : f32
    %47 = vector.broadcast %cst_26 : f32 to vector<2x256xf32>
    %c0_27 = arith.constant 0 : index
    %c512 = arith.constant 512 : index
    %48 = vector.load %arg13[%c0_27, %c512] : memref<2x768xf32, #tpu.memory_space<vmem>>, vector<2x256xf32>
    tpu.vector_store %arg13[%c0_27, %c512], %47 {strides = array<i32>} : memref<2x768xf32, #tpu.memory_space<vmem>>, vector<2x256xf32>,
    %49 = tpu.iota {dimensions = array<i32: 0>} : vector<2x1xi32>
    %c0_i32_28 = arith.constant 0 : i32
    %50 = vector.broadcast %c0_i32_28 : i32 to vector<2x1xi32>
    %51 = arith.cmpi eq, %49, %50 : vector<2x1xi32>
    %52 = vector.shape_cast %51 : vector<2x1xi1> to vector<2x1xi1>
    %53 = vector.broadcast %52 : vector<2x1xi1> to vector<2x256xi1>
    %54 = vector.shape_cast %42 : vector<1x256xf32> to vector<1x256xf32>
    %55 = vector.broadcast %54 : vector<1x256xf32> to vector<2x256xf32>
    %56 = vector.shape_cast %44 : vector<1x256xf32> to vector<1x256xf32>
    %57 = vector.broadcast %56 : vector<1x256xf32> to vector<2x256xf32>
    %58 = arith.select %53, %55, %57 : vector<2x256xi1>, vector<2x256xf32>
    %c0_29 = arith.constant 0 : index
    %c256 = arith.constant 256 : index
    %59 = vector.load %arg13[%c0_29, %c256] : memref<2x768xf32, #tpu.memory_space<vmem>>, vector<2x256xf32>
    tpu.vector_store %arg13[%c0_29, %c256], %58 {strides = array<i32>} : memref<2x768xf32, #tpu.memory_space<vmem>>, vector<2x256xf32>,
    %c0_30 = arith.constant 0 : index
    %c103 = arith.constant 103 : index
    %60 = vector.load %arg13[%c0_30, %c103] : memref<2x768xf32, #tpu.memory_space<vmem>>, vector<2x256xf32>
    %c0_31 = arith.constant 0 : index
    %c106 = arith.constant 106 : index
    %61 = vector.load %arg13[%c0_31, %c106] : memref<2x768xf32, #tpu.memory_space<vmem>>, vector<2x256xf32>
    %c0_32 = arith.constant 0 : index
    %c109 = arith.constant 109 : index
    %62 = vector.load %arg13[%c0_32, %c109] : memref<2x768xf32, #tpu.memory_space<vmem>>, vector<2x256xf32>
    %c0_33 = arith.constant 0 : index
    %c112 = arith.constant 112 : index
    %63 = vector.load %arg13[%c0_33, %c112] : memref<2x768xf32, #tpu.memory_space<vmem>>, vector<2x256xf32>
    %64 = tpu.concatenate %60, %61, %62, %63 in 0 : vector<2x256xf32>, vector<2x256xf32>, vector<2x256xf32>, vector<2x256xf32> -> vector<8x256xf32>
    %c0_34 = arith.constant 0 : index
    %c0_35 = arith.constant 0 : index
    %65 = vector.load %arg2[%c0_34, %c0_35] : memref<104x256xf32, #tpu.memory_space<vmem>>, vector<8x256xf32>
    %66 = arith.mulf %64, %65 : vector<8x256xf32>
    %c0_36 = arith.constant 0 : index
    %c0_37 = arith.constant 0 : index
    %67 = vector.load %arg14[%c0_36, %c0_37] : memref<104x256xf32, #tpu.memory_space<vmem>>, vector<8x256xf32>
    tpu.vector_store %arg14[%c0_36, %c0_37], %66 {strides = array<i32>} : memref<104x256xf32, #tpu.memory_space<vmem>>, vector<8x256xf32>,
    %c0_38 = arith.constant 0 : index
    %c115 = arith.constant 115 : index
    %68 = vector.load %arg13[%c0_38, %c115] : memref<2x768xf32, #tpu.memory_space<vmem>>, vector<2x256xf32>
    %c0_39 = arith.constant 0 : index
    %c118 = arith.constant 118 : index
    %69 = vector.load %arg13[%c0_39, %c118] : memref<2x768xf32, #tpu.memory_space<vmem>>, vector<2x256xf32>
    %c0_40 = arith.constant 0 : index
    %c121 = arith.constant 121 : index
    %70 = vector.load %arg13[%c0_40, %c121] : memref<2x768xf32, #tpu.memory_space<vmem>>, vector<2x256xf32>
    %c0_41 = arith.constant 0 : index
    %c151 = arith.constant 151 : index
    %71 = vector.load %arg13[%c0_41, %c151] : memref<2x768xf32, #tpu.memory_space<vmem>>, vector<2x256xf32>
    %72 = tpu.concatenate %68, %69, %70, %71 in 0 : vector<2x256xf32>, vector<2x256xf32>, vector<2x256xf32>, vector<2x256xf32> -> vector<8x256xf32>
    %c8 = arith.constant 8 : index
    %c0_42 = arith.constant 0 : index
    %73 = vector.load %arg2[%c8, %c0_42] : memref<104x256xf32, #tpu.memory_space<vmem>>, vector<8x256xf32>
    %74 = arith.mulf %72, %73 : vector<8x256xf32>
    %c8_43 = arith.constant 8 : index
    %c0_44 = arith.constant 0 : index
    %75 = vector.load %arg14[%c8_43, %c0_44] : memref<104x256xf32, #tpu.memory_space<vmem>>, vector<8x256xf32>
    tpu.vector_store %arg14[%c8_43, %c0_44], %74 {strides = array<i32>} : memref<104x256xf32, #tpu.memory_space<vmem>>, vector<8x256xf32>,
    %c0_45 = arith.constant 0 : index
    %c154 = arith.constant 154 : index
    %76 = vector.load %arg13[%c0_45, %c154] : memref<2x768xf32, #tpu.memory_space<vmem>>, vector<2x256xf32>
    %c0_46 = arith.constant 0 : index
    %c157 = arith.constant 157 : index
    %77 = vector.load %arg13[%c0_46, %c157] : memref<2x768xf32, #tpu.memory_space<vmem>>, vector<2x256xf32>
    %c0_47 = arith.constant 0 : index
    %c160 = arith.constant 160 : index
    %78 = vector.load %arg13[%c0_47, %c160] : memref<2x768xf32, #tpu.memory_space<vmem>>, vector<2x256xf32>
    %c0_48 = arith.constant 0 : index
    %c163 = arith.constant 163 : index
    %79 = vector.load %arg13[%c0_48, %c163] : memref<2x768xf32, #tpu.memory_space<vmem>>, vector<2x256xf32>
    %80 = tpu.concatenate %76, %77, %78, %79 in 0 : vector<2x256xf32>, vector<2x256xf32>, vector<2x256xf32>, vector<2x256xf32> -> vector<8x256xf32>
    %c16 = arith.constant 16 : index
    %c0_49 = arith.constant 0 : index
    %81 = vector.load %arg2[%c16, %c0_49] : memref<104x256xf32, #tpu.memory_space<vmem>>, vector<8x256xf32>
    %82 = arith.mulf %80, %81 : vector<8x256xf32>
    %c16_50 = arith.constant 16 : index
    %c0_51 = arith.constant 0 : index
    %83 = vector.load %arg14[%c16_50, %c0_51] : memref<104x256xf32, #tpu.memory_space<vmem>>, vector<8x256xf32>
    tpu.vector_store %arg14[%c16_50, %c0_51], %82 {strides = array<i32>} : memref<104x256xf32, #tpu.memory_space<vmem>>, vector<8x256xf32>,
    %c0_52 = arith.constant 0 : index
    %c166 = arith.constant 166 : index
    %84 = vector.load %arg13[%c0_52, %c166] : memref<2x768xf32, #tpu.memory_space<vmem>>, vector<2x256xf32>
    %c0_53 = arith.constant 0 : index
    %c169 = arith.constant 169 : index
    %85 = vector.load %arg13[%c0_53, %c169] : memref<2x768xf32, #tpu.memory_space<vmem>>, vector<2x256xf32>
    %c0_54 = arith.constant 0 : index
    %c199 = arith.constant 199 : index
    %86 = vector.load %arg13[%c0_54, %c199] : memref<2x768xf32, #tpu.memory_space<vmem>>, vector<2x256xf32>
    %c0_55 = arith.constant 0 : index
    %c202 = arith.constant 202 : index
    %87 = vector.load %arg13[%c0_55, %c202] : memref<2x768xf32, #tpu.memory_space<vmem>>, vector<2x256xf32>
    %88 = tpu.concatenate %84, %85, %86, %87 in 0 : vector<2x256xf32>, vector<2x256xf32>, vector<2x256xf32>, vector<2x256xf32> -> vector<8x256xf32>
    %c24 = arith.constant 24 : index
    %c0_56 = arith.constant 0 : index
    %89 = vector.load %arg2[%c24, %c0_56] : memref<104x256xf32, #tpu.memory_space<vmem>>, vector<8x256xf32>
    %90 = arith.mulf %88, %89 : vector<8x256xf32>
    %c24_57 = arith.constant 24 : index
    %c0_58 = arith.constant 0 : index
    %91 = vector.load %arg14[%c24_57, %c0_58] : memref<104x256xf32, #tpu.memory_space<vmem>>, vector<8x256xf32>
    tpu.vector_store %arg14[%c24_57, %c0_58], %90 {strides = array<i32>} : memref<104x256xf32, #tpu.memory_space<vmem>>, vector<8x256xf32>,
    %c0_59 = arith.constant 0 : index
    %c205 = arith.constant 205 : index
    %92 = vector.load %arg13[%c0_59, %c205] : memref<2x768xf32, #tpu.memory_space<vmem>>, vector<2x256xf32>
    %c0_60 = arith.constant 0 : index
    %c208 = arith.constant 208 : index
    %93 = vector.load %arg13[%c0_60, %c208] : memref<2x768xf32, #tpu.memory_space<vmem>>, vector<2x256xf32>
    %c0_61 = arith.constant 0 : index
    %c211 = arith.constant 211 : index
    %94 = vector.load %arg13[%c0_61, %c211] : memref<2x768xf32, #tpu.memory_space<vmem>>, vector<2x256xf32>
    %c0_62 = arith.constant 0 : index
    %c214 = arith.constant 214 : index
    %95 = vector.load %arg13[%c0_62, %c214] : memref<2x768xf32, #tpu.memory_space<vmem>>, vector<2x256xf32>
    %96 = tpu.concatenate %92, %93, %94, %95 in 0 : vector<2x256xf32>, vector<2x256xf32>, vector<2x256xf32>, vector<2x256xf32> -> vector<8x256xf32>
    %c32 = arith.constant 32 : index
    %c0_63 = arith.constant 0 : index
    %97 = vector.load %arg2[%c32, %c0_63] : memref<104x256xf32, #tpu.memory_space<vmem>>, vector<8x256xf32>
    %98 = arith.mulf %96, %97 : vector<8x256xf32>
    %c32_64 = arith.constant 32 : index
    %c0_65 = arith.constant 0 : index
    %99 = vector.load %arg14[%c32_64, %c0_65] : memref<104x256xf32, #tpu.memory_space<vmem>>, vector<8x256xf32>
    tpu.vector_store %arg14[%c32_64, %c0_65], %98 {strides = array<i32>} : memref<104x256xf32, #tpu.memory_space<vmem>>, vector<8x256xf32>,
    %c0_66 = arith.constant 0 : index
    %c217 = arith.constant 217 : index
    %100 = vector.load %arg13[%c0_66, %c217] : memref<2x768xf32, #tpu.memory_space<vmem>>, vector<2x256xf32>
    %c0_67 = arith.constant 0 : index
    %c247 = arith.constant 247 : index
    %101 = vector.load %arg13[%c0_67, %c247] : memref<2x768xf32, #tpu.memory_space<vmem>>, vector<2x256xf32>
    %c0_68 = arith.constant 0 : index
    %c250 = arith.constant 250 : index
    %102 = vector.load %arg13[%c0_68, %c250] : memref<2x768xf32, #tpu.memory_space<vmem>>, vector<2x256xf32>
    %c0_69 = arith.constant 0 : index
    %c253 = arith.constant 253 : index
    %103 = vector.load %arg13[%c0_69, %c253] : memref<2x768xf32, #tpu.memory_space<vmem>>, vector<2x256xf32>
    %104 = tpu.concatenate %100, %101, %102, %103 in 0 : vector<2x256xf32>, vector<2x256xf32>, vector<2x256xf32>, vector<2x256xf32> -> vector<8x256xf32>
    %c40 = arith.constant 40 : index
    %c0_70 = arith.constant 0 : index
    %105 = vector.load %arg2[%c40, %c0_70] : memref<104x256xf32, #tpu.memory_space<vmem>>, vector<8x256xf32>
    %106 = arith.mulf %104, %105 : vector<8x256xf32>
    %c40_71 = arith.constant 40 : index
    %c0_72 = arith.constant 0 : index
    %107 = vector.load %arg14[%c40_71, %c0_72] : memref<104x256xf32, #tpu.memory_space<vmem>>, vector<8x256xf32>
    tpu.vector_store %arg14[%c40_71, %c0_72], %106 {strides = array<i32>} : memref<104x256xf32, #tpu.memory_space<vmem>>, vector<8x256xf32>,
    %c0_73 = arith.constant 0 : index
    %c256_74 = arith.constant 256 : index
    %108 = vector.load %arg13[%c0_73, %c256_74] : memref<2x768xf32, #tpu.memory_space<vmem>>, vector<2x256xf32>
    %c0_75 = arith.constant 0 : index
    %c259 = arith.constant 259 : index
    %109 = vector.load %arg13[%c0_75, %c259] : memref<2x768xf32, #tpu.memory_space<vmem>>, vector<2x256xf32>
    %c0_76 = arith.constant 0 : index
    %c262 = arith.constant 262 : index
    %110 = vector.load %arg13[%c0_76, %c262] : memref<2x768xf32, #tpu.memory_space<vmem>>, vector<2x256xf32>
    %c0_77 = arith.constant 0 : index
    %c265 = arith.constant 265 : index
    %111 = vector.load %arg13[%c0_77, %c265] : memref<2x768xf32, #tpu.memory_space<vmem>>, vector<2x256xf32>
    %112 = tpu.concatenate %108, %109, %110, %111 in 0 : vector<2x256xf32>, vector<2x256xf32>, vector<2x256xf32>, vector<2x256xf32> -> vector<8x256xf32>
    %c48 = arith.constant 48 : index
    %c0_78 = arith.constant 0 : index
    %113 = vector.load %arg2[%c48, %c0_78] : memref<104x256xf32, #tpu.memory_space<vmem>>, vector<8x256xf32>
    %114 = arith.mulf %112, %113 : vector<8x256xf32>
    %c48_79 = arith.constant 48 : index
    %c0_80 = arith.constant 0 : index
    %115 = vector.load %arg14[%c48_79, %c0_80] : memref<104x256xf32, #tpu.memory_space<vmem>>, vector<8x256xf32>
    tpu.vector_store %arg14[%c48_79, %c0_80], %114 {strides = array<i32>} : memref<104x256xf32, #tpu.memory_space<vmem>>, vector<8x256xf32>,
    %c0_81 = arith.constant 0 : index
    %c295 = arith.constant 295 : index
    %116 = vector.load %arg13[%c0_81, %c295] : memref<2x768xf32, #tpu.memory_space<vmem>>, vector<2x256xf32>
    %c0_82 = arith.constant 0 : index
    %c298 = arith.constant 298 : index
    %117 = vector.load %arg13[%c0_82, %c298] : memref<2x768xf32, #tpu.memory_space<vmem>>, vector<2x256xf32>
    %c0_83 = arith.constant 0 : index
    %c301 = arith.constant 301 : index
    %118 = vector.load %arg13[%c0_83, %c301] : memref<2x768xf32, #tpu.memory_space<vmem>>, vector<2x256xf32>
    %c0_84 = arith.constant 0 : index
    %c304 = arith.constant 304 : index
    %119 = vector.load %arg13[%c0_84, %c304] : memref<2x768xf32, #tpu.memory_space<vmem>>, vector<2x256xf32>
    %120 = tpu.concatenate %116, %117, %118, %119 in 0 : vector<2x256xf32>, vector<2x256xf32>, vector<2x256xf32>, vector<2x256xf32> -> vector<8x256xf32>
    %c56 = arith.constant 56 : index
    %c0_85 = arith.constant 0 : index
    %121 = vector.load %arg2[%c56, %c0_85] : memref<104x256xf32, #tpu.memory_space<vmem>>, vector<8x256xf32>
    %122 = arith.mulf %120, %121 : vector<8x256xf32>
    %c56_86 = arith.constant 56 : index
    %c0_87 = arith.constant 0 : index
    %123 = vector.load %arg14[%c56_86, %c0_87] : memref<104x256xf32, #tpu.memory_space<vmem>>, vector<8x256xf32>
    tpu.vector_store %arg14[%c56_86, %c0_87], %122 {strides = array<i32>} : memref<104x256xf32, #tpu.memory_space<vmem>>, vector<8x256xf32>,
    %c0_88 = arith.constant 0 : index
    %c307 = arith.constant 307 : index
    %124 = vector.load %arg13[%c0_88, %c307] : memref<2x768xf32, #tpu.memory_space<vmem>>, vector<2x256xf32>
    %c0_89 = arith.constant 0 : index
    %c310 = arith.constant 310 : index
    %125 = vector.load %arg13[%c0_89, %c310] : memref<2x768xf32, #tpu.memory_space<vmem>>, vector<2x256xf32>
    %c0_90 = arith.constant 0 : index
    %c313 = arith.constant 313 : index
    %126 = vector.load %arg13[%c0_90, %c313] : memref<2x768xf32, #tpu.memory_space<vmem>>, vector<2x256xf32>
    %c0_91 = arith.constant 0 : index
    %c343 = arith.constant 343 : index
    %127 = vector.load %arg13[%c0_91, %c343] : memref<2x768xf32, #tpu.memory_space<vmem>>, vector<2x256xf32>
    %128 = tpu.concatenate %124, %125, %126, %127 in 0 : vector<2x256xf32>, vector<2x256xf32>, vector<2x256xf32>, vector<2x256xf32> -> vector<8x256xf32>
    %c64 = arith.constant 64 : index
    %c0_92 = arith.constant 0 : index
    %129 = vector.load %arg2[%c64, %c0_92] : memref<104x256xf32, #tpu.memory_space<vmem>>, vector<8x256xf32>
    %130 = arith.mulf %128, %129 : vector<8x256xf32>
    %c64_93 = arith.constant 64 : index
    %c0_94 = arith.constant 0 : index
    %131 = vector.load %arg14[%c64_93, %c0_94] : memref<104x256xf32, #tpu.memory_space<vmem>>, vector<8x256xf32>
    tpu.vector_store %arg14[%c64_93, %c0_94], %130 {strides = array<i32>} : memref<104x256xf32, #tpu.memory_space<vmem>>, vector<8x256xf32>,
    %c0_95 = arith.constant 0 : index
    %c346 = arith.constant 346 : index
    %132 = vector.load %arg13[%c0_95, %c346] : memref<2x768xf32, #tpu.memory_space<vmem>>, vector<2x256xf32>
    %c0_96 = arith.constant 0 : index
    %c349 = arith.constant 349 : index
    %133 = vector.load %arg13[%c0_96, %c349] : memref<2x768xf32, #tpu.memory_space<vmem>>, vector<2x256xf32>
    %c0_97 = arith.constant 0 : index
    %c352 = arith.constant 352 : index
    %134 = vector.load %arg13[%c0_97, %c352] : memref<2x768xf32, #tpu.memory_space<vmem>>, vector<2x256xf32>
    %c0_98 = arith.constant 0 : index
    %c355 = arith.constant 355 : index
    %135 = vector.load %arg13[%c0_98, %c355] : memref<2x768xf32, #tpu.memory_space<vmem>>, vector<2x256xf32>
    %136 = tpu.concatenate %132, %133, %134, %135 in 0 : vector<2x256xf32>, vector<2x256xf32>, vector<2x256xf32>, vector<2x256xf32> -> vector<8x256xf32>
    %c72 = arith.constant 72 : index
    %c0_99 = arith.constant 0 : index
    %137 = vector.load %arg2[%c72, %c0_99] : memref<104x256xf32, #tpu.memory_space<vmem>>, vector<8x256xf32>
    %138 = arith.mulf %136, %137 : vector<8x256xf32>
    %c72_100 = arith.constant 72 : index
    %c0_101 = arith.constant 0 : index
    %139 = vector.load %arg14[%c72_100, %c0_101] : memref<104x256xf32, #tpu.memory_space<vmem>>, vector<8x256xf32>
    tpu.vector_store %arg14[%c72_100, %c0_101], %138 {strides = array<i32>} : memref<104x256xf32, #tpu.memory_space<vmem>>, vector<8x256xf32>,
    %c0_102 = arith.constant 0 : index
    %c358 = arith.constant 358 : index
    %140 = vector.load %arg13[%c0_102, %c358] : memref<2x768xf32, #tpu.memory_space<vmem>>, vector<2x256xf32>
    %c0_103 = arith.constant 0 : index
    %c361 = arith.constant 361 : index
    %141 = vector.load %arg13[%c0_103, %c361] : memref<2x768xf32, #tpu.memory_space<vmem>>, vector<2x256xf32>
    %c0_104 = arith.constant 0 : index
    %c391 = arith.constant 391 : index
    %142 = vector.load %arg13[%c0_104, %c391] : memref<2x768xf32, #tpu.memory_space<vmem>>, vector<2x256xf32>
    %c0_105 = arith.constant 0 : index
    %c394 = arith.constant 394 : index
    %143 = vector.load %arg13[%c0_105, %c394] : memref<2x768xf32, #tpu.memory_space<vmem>>, vector<2x256xf32>
    %144 = tpu.concatenate %140, %141, %142, %143 in 0 : vector<2x256xf32>, vector<2x256xf32>, vector<2x256xf32>, vector<2x256xf32> -> vector<8x256xf32>
    %c80 = arith.constant 80 : index
    %c0_106 = arith.constant 0 : index
    %145 = vector.load %arg2[%c80, %c0_106] : memref<104x256xf32, #tpu.memory_space<vmem>>, vector<8x256xf32>
    %146 = arith.mulf %144, %145 : vector<8x256xf32>
    %c80_107 = arith.constant 80 : index
    %c0_108 = arith.constant 0 : index
    %147 = vector.load %arg14[%c80_107, %c0_108] : memref<104x256xf32, #tpu.memory_space<vmem>>, vector<8x256xf32>
    tpu.vector_store %arg14[%c80_107, %c0_108], %146 {strides = array<i32>} : memref<104x256xf32, #tpu.memory_space<vmem>>, vector<8x256xf32>,
    %c0_109 = arith.constant 0 : index
    %c397 = arith.constant 397 : index
    %148 = vector.load %arg13[%c0_109, %c397] : memref<2x768xf32, #tpu.memory_space<vmem>>, vector<2x256xf32>
    %c0_110 = arith.constant 0 : index
    %c400 = arith.constant 400 : index
    %149 = vector.load %arg13[%c0_110, %c400] : memref<2x768xf32, #tpu.memory_space<vmem>>, vector<2x256xf32>
    %c0_111 = arith.constant 0 : index
    %c403 = arith.constant 403 : index
    %150 = vector.load %arg13[%c0_111, %c403] : memref<2x768xf32, #tpu.memory_space<vmem>>, vector<2x256xf32>
    %c0_112 = arith.constant 0 : index
    %c406 = arith.constant 406 : index
    %151 = vector.load %arg13[%c0_112, %c406] : memref<2x768xf32, #tpu.memory_space<vmem>>, vector<2x256xf32>
    %152 = tpu.concatenate %148, %149, %150, %151 in 0 : vector<2x256xf32>, vector<2x256xf32>, vector<2x256xf32>, vector<2x256xf32> -> vector<8x256xf32>
    %c88 = arith.constant 88 : index
    %c0_113 = arith.constant 0 : index
    %153 = vector.load %arg2[%c88, %c0_113] : memref<104x256xf32, #tpu.memory_space<vmem>>, vector<8x256xf32>
    %154 = arith.mulf %152, %153 : vector<8x256xf32>
    %c88_114 = arith.constant 88 : index
    %c0_115 = arith.constant 0 : index
    %155 = vector.load %arg14[%c88_114, %c0_115] : memref<104x256xf32, #tpu.memory_space<vmem>>, vector<8x256xf32>
    tpu.vector_store %arg14[%c88_114, %c0_115], %154 {strides = array<i32>} : memref<104x256xf32, #tpu.memory_space<vmem>>, vector<8x256xf32>,
    %c0_116 = arith.constant 0 : index
    %c409 = arith.constant 409 : index
    %156 = vector.load %arg13[%c0_116, %c409] : memref<2x768xf32, #tpu.memory_space<vmem>>, vector<2x256xf32>
    %c0_117 = arith.constant 0 : index
    %c409_118 = arith.constant 409 : index
    %157 = vector.load %arg13[%c0_117, %c409_118] : memref<2x768xf32, #tpu.memory_space<vmem>>, vector<2x256xf32>
    %c0_119 = arith.constant 0 : index
    %c409_120 = arith.constant 409 : index
    %158 = vector.load %arg13[%c0_119, %c409_120] : memref<2x768xf32, #tpu.memory_space<vmem>>, vector<2x256xf32>
    %c0_121 = arith.constant 0 : index
    %c409_122 = arith.constant 409 : index
    %159 = vector.load %arg13[%c0_121, %c409_122] : memref<2x768xf32, #tpu.memory_space<vmem>>, vector<2x256xf32>
    %160 = tpu.concatenate %156, %157, %158, %159 in 0 : vector<2x256xf32>, vector<2x256xf32>, vector<2x256xf32>, vector<2x256xf32> -> vector<8x256xf32>
    %c96 = arith.constant 96 : index
    %c0_123 = arith.constant 0 : index
    %161 = vector.load %arg2[%c96, %c0_123] : memref<104x256xf32, #tpu.memory_space<vmem>>, vector<8x256xf32>
    %162 = arith.mulf %160, %161 : vector<8x256xf32>
    %c96_124 = arith.constant 96 : index
    %c0_125 = arith.constant 0 : index
    %163 = vector.load %arg14[%c96_124, %c0_125] : memref<104x256xf32, #tpu.memory_space<vmem>>, vector<8x256xf32>
    tpu.vector_store %arg14[%c96_124, %c0_125], %162 {strides = array<i32>} : memref<104x256xf32, #tpu.memory_space<vmem>>, vector<8x256xf32>,
    %c0_126 = arith.constant 0 : index
    %c0_127 = arith.constant 0 : index
    %164 = vector.load %arg7[%c0_126, %c0_127] : memref<32x104xf32, #tpu.memory_space<vmem>>, vector<32x104xf32>
    %c0_128 = arith.constant 0 : index
    %c0_129 = arith.constant 0 : index
    %165 = vector.load %arg14[%c0_128, %c0_129] : memref<104x256xf32, #tpu.memory_space<vmem>>, vector<104x256xf32>
    %cst_130 = arith.constant dense<0.000000e+00> : vector<32x256xf32>
    %166 = tpu.matmul %164, %165, %cst_130 {dimension_numbers = #tpu.dot_dimension_numbers<[1], [0], [0], [1], [0, 0, 1, 1], [], []>} : vector<32x104xf32>, vector<104x256xf32>, vector<32x256xf32> -> vector<32x256xf32>
    %c0_131 = arith.constant 0 : index
    %c0_132 = arith.constant 0 : index
    %167 = vector.load %arg8[%c0_131, %c0_132] : memref<32x1xf32, #tpu.memory_space<vmem>>, vector<32x1xf32>
    %168 = vector.broadcast %167 : vector<32x1xf32> to vector<32x256xf32>
    %169 = arith.addf %166, %168 : vector<32x256xf32>
    %170 = arith.negf %169 : vector<32x256xf32>
    %171 = math.exp %170 : vector<32x256xf32>
    %cst_133 = arith.constant 1.000000e+00 : f32
    %172 = vector.broadcast %cst_133 : f32 to vector<32x256xf32>
    %173 = arith.addf %172, %171 : vector<32x256xf32>
    %174 = arith.divf %172, %173 : vector<32x256xf32>
    %c0_134 = arith.constant 0 : index
    %c0_135 = arith.constant 0 : index
    %175 = vector.load %arg10[%c0_134, %c0_135] : memref<32x32xf32, #tpu.memory_space<vmem>>, vector<32x32xf32>
    %cst_136 = arith.constant dense<0.000000e+00> : vector<32x256xf32>
    %176 = tpu.matmul %175, %174, %cst_136 {dimension_numbers = #tpu.dot_dimension_numbers<[1], [0], [0], [1], [0, 0, 1, 1], [], []>} : vector<32x32xf32>, vector<32x256xf32>, vector<32x256xf32> -> vector<32x256xf32>
    %177 = vector.broadcast %38 : vector<32x1xf32> to vector<32x256xf32>
    %178 = arith.addf %176, %177 : vector<32x256xf32>
    %c0_137 = arith.constant 0 : index
    %c0_138 = arith.constant 0 : index
    %179 = vector.load %arg11[%c0_137, %c0_138] : memref<32x1xf32, #tpu.memory_space<vmem>>, vector<32x1xf32>
    %180 = vector.broadcast %179 : vector<32x1xf32> to vector<32x256xf32>
    %181 = arith.addf %178, %180 : vector<32x256xf32>
    %182 = arith.negf %181 : vector<32x256xf32>
    %183 = math.exp %182 : vector<32x256xf32>
    %cst_139 = arith.constant 1.000000e+00 : f32
    %184 = vector.broadcast %cst_139 : f32 to vector<32x256xf32>
    %185 = arith.addf %184, %183 : vector<32x256xf32>
    %186 = arith.divf %184, %185 : vector<32x256xf32>
    %187 = vector.broadcast %36 : vector<32x1xf32> to vector<32x256xf32>
    %188 = arith.mulf %186, %187 : vector<32x256xf32>
    %189 = arith.mulf %188, %174 : vector<32x256xf32>
    %190 = arith.addf %189, %1 : vector<32x256xf32>
    %c0_140 = arith.constant 0 : index
    %c0_141 = arith.constant 0 : index
    %c0_142 = arith.constant 0 : index
    %191 = vector.load %arg12[%c0_140, %c0_141, %c0_142] : memref<1x32x256xf32, #tpu.memory_space<vmem>>, vector<1x32x256xf32>
    %192 = vector.shape_cast %191 : vector<1x32x256xf32> to vector<32x256xf32>
    %193 = vector.shape_cast %190 : vector<32x256xf32> to vector<1x32x256xf32>
    tpu.vector_store %arg12[%c0_140, %c0_141, %c0_142], %193 {strides = array<i32>} : memref<1x32x256xf32, #tpu.memory_space<vmem>>, vector<1x32x256xf32>,
    return
  }
  func.func @transform_0(%arg0: i32) -> (i32, i32, i32) {
    %c0_i32 = arith.constant 0 : i32
    %c0_i32_0 = arith.constant 0 : i32
    %c0_i32_1 = arith.constant 0 : i32
    return %arg0, %c0_i32, %c0_i32_0 : i32, i32, i32
  }
  func.func @transform_1(%arg0: i32) -> (i32, i32) {
    %c0_i32 = arith.constant 0 : i32
    %c0_i32_0 = arith.constant 0 : i32
    %c0_i32_1 = arith.constant 0 : i32
    return %c0_i32, %c0_i32_0 : i32, i32
  }
  func.func @transform_2(%arg0: i32) -> (i32, i32) {
    %c0_i32 = arith.constant 0 : i32
    %c0_i32_0 = arith.constant 0 : i32
    %c0_i32_1 = arith.constant 0 : i32
    return %c0_i32, %c0_i32_0 : i32, i32
  }
  func.func @transform_3(%arg0: i32) -> (i32, i32) {
    %c0_i32 = arith.constant 0 : i32
    %c0_i32_0 = arith.constant 0 : i32
    %c0_i32_1 = arith.constant 0 : i32
    return %c0_i32, %c0_i32_0 : i32, i32
  }
  func.func @transform_4(%arg0: i32) -> (i32, i32) {
    %c0_i32 = arith.constant 0 : i32
    %c0_i32_0 = arith.constant 0 : i32
    %c0_i32_1 = arith.constant 0 : i32
    return %c0_i32, %c0_i32_0 : i32, i32
  }
  func.func @transform_5(%arg0: i32) -> (i32, i32) {
    %c0_i32 = arith.constant 0 : i32
    %c0_i32_0 = arith.constant 0 : i32
    %c0_i32_1 = arith.constant 0 : i32
    return %c0_i32, %c0_i32_0 : i32, i32
  }
  func.func @transform_6(%arg0: i32) -> (i32, i32) {
    %c0_i32 = arith.constant 0 : i32
    %c0_i32_0 = arith.constant 0 : i32
    %c0_i32_1 = arith.constant 0 : i32
    return %c0_i32, %c0_i32_0 : i32, i32
  }
  func.func @transform_7(%arg0: i32) -> (i32, i32) {
    %c0_i32 = arith.constant 0 : i32
    %c0_i32_0 = arith.constant 0 : i32
    %c0_i32_1 = arith.constant 0 : i32
    return %c0_i32, %c0_i32_0 : i32, i32
  }
  func.func @transform_8(%arg0: i32) -> (i32, i32) {
    %c0_i32 = arith.constant 0 : i32
    %c0_i32_0 = arith.constant 0 : i32
    %c0_i32_1 = arith.constant 0 : i32
    return %c0_i32, %c0_i32_0 : i32, i32
  }
  func.func @transform_9(%arg0: i32) -> (i32, i32) {
    %c0_i32 = arith.constant 0 : i32
    %c0_i32_0 = arith.constant 0 : i32
    %c0_i32_1 = arith.constant 0 : i32
    return %c0_i32, %c0_i32_0 : i32, i32
  }
  func.func @transform_10(%arg0: i32) -> (i32, i32) {
    %c0_i32 = arith.constant 0 : i32
    %c0_i32_0 = arith.constant 0 : i32
    %c0_i32_1 = arith.constant 0 : i32
    return %c0_i32, %c0_i32_0 : i32, i32
  }
  func.func @transform_11(%arg0: i32) -> (i32, i32, i32) {
    %c0_i32 = arith.constant 0 : i32
    %c0_i32_0 = arith.constant 0 : i32
    %c0_i32_1 = arith.constant 0 : i32
    return %arg0, %c0_i32, %c0_i32_0 : i32, i32, i32
  }
}

</mosaic_0001>

<llo_original>
// kernel: tpu_custom_call.1
$region0: #{tpu_custom_call.1}
  #allocation0 [shape = 'u32[]', space=smem, size = 0x4, offset = 0x4, fixed_abs, tag = 'smem constant byte address 0x4 - core index']
  #allocation1 [shape = 'u32[144,128]{1,0:T(1,128)}', space=vmem, size = 0x12000, scoped, tag = 'internal scratch']
  #allocation2 [shape = 'f32[2,768]{1,0:T(2,128)}', space=vmem, size = 0x1800, scoped, tag = 'scratch operand']
  #allocation3 [shape = 'f32[104,256]{1,0:T(8,128)}', space=vmem, size = 0x1a000, scoped, tag = 'scratch operand']
  %s0 = inlined_call_operand.vmem [shape: f32[2,32,256], index: 0, kind: input, shape index: {}]
  %s1 = inlined_call_operand.hbm [shape: f32[104,256], index: 1, kind: input, shape index: {}]
  %s2 = inlined_call_operand.vmem [shape: f32[2,32], index: 2, kind: input, shape index: {}]
  %s3 = inlined_call_operand.vmem [shape: f32[2,1], index: 3, kind: input, shape index: {}]
  %s4 = inlined_call_operand.vmem [shape: f32[32,2], index: 4, kind: input, shape index: {}]
  %s5 = inlined_call_operand.vmem [shape: f32[32,1], index: 5, kind: input, shape index: {}]
  %s6 = inlined_call_operand.hbm [shape: f32[32,104], index: 6, kind: input, shape index: {}]
  %s7 = inlined_call_operand.vmem [shape: f32[32,1], index: 7, kind: input, shape index: {}]
  %s8 = inlined_call_operand.vmem [shape: f32[32,32], index: 8, kind: input, shape index: {}]
  %s9 = inlined_call_operand.hbm [shape: f32[32,32], index: 9, kind: input, shape index: {}]
  %s10 = inlined_call_operand.vmem [shape: f32[32,1], index: 10, kind: input, shape index: {}]
  %s11 = inlined_call_operand.hbm [shape: f32[2,32,256], index: 11, kind: output, shape index: {}]
  %s12 = sld [smem:[#allocation0]]
  $region89: #{tpu_custom_call.1} parent=0
    _
  %s14 = ssub.s32 1, %s12
  %s15 = scalar_select 0, %s14, %s12
  $region1: #{tpu_custom_call.1} parent=0
    #allocation4 [shape = 'u8[106496]{0}', space=vmem, size = 0x1a000, scoped, tag = 'input window, operand 1, single buffered']
    #allocation5 [shape = 's32[2]{0}', space=sflag, size = 0x8, scoped, tag = 'scoped memory for tpu_custom_call.1']
    #allocation6 [shape = 's32[2]{0}', space=sflag, size = 0x8, scoped, tag = 'scoped memory for tpu_custom_call.1']
    #allocation7 [shape = 'u8[16384]{0}', space=vmem, size = 0x4000, scoped, tag = 'input window, operand 6, single buffered']
    #allocation8 [shape = 's32[1]{0}', space=sflag, size = 0x4, scoped, tag = 'scoped memory for tpu_custom_call.1']
    #allocation9 [shape = 'u8[16384]{0}', space=vmem, size = 0x4000, scoped, tag = 'input window, operand 9, single buffered']
    #allocation10 [shape = 'u8[65536]{0}', space=vmem, size = 0x10000, scoped, tag = 'output window, operand 0']
    %16 = vsyncpa [#allocation5], 0
    %17 = vsyncpa [#allocation8], 0
    %18 = vsyncpa [#allocation6], 0
    %s19 = scalar_lea.sflag [#allocation6], 1
    %20 = vsyncpa %s19, 0
    loop: start=0, step=1, limit=4
    $region2: #{tpu_custom_call.1} parent=1 // loop_pre_header
      _
    $region3: #{tpu_custom_call.1} parent=1 // loop_header
      %s22 = sphi 0, %s26
      %p23 = scmp.ge.s32.totalorder %s22, 4
      %s32 = sphi 0, %s34
      %s35 = sphi 0, %s32
      %s36 = sphi 0, %s35
      %s52 = sphi 0, %s36
      %s56 = sphi 0, %s56
      %s58 = sphi 0, %s56
      %s59 = sphi 0, %s58
      %s73 = sphi 0, %s59
      %s77 = sphi 0, %s77
      %s79 = sphi 0, %s77
      %s80 = sphi 0, %s79
      %s94 = sphi 0, %s80
      %s98 = sphi 0, %s98
      %s100 = sphi 0, %s98
      %s101 = sphi 0, %s100
      %s115 = sphi 0, %s101
      %s119 = sphi 0, %s119
      %s121 = sphi 0, %s119
      %s122 = sphi 0, %s121
      %s136 = sphi 0, %s122
      %s140 = sphi 0, %s140
      %s142 = sphi 0, %s140
      %s143 = sphi 0, %s142
      %s157 = sphi 0, %s143
      %s161 = sphi 0, %s161
      %s163 = sphi 0, %s161
      %s164 = sphi 0, %s163
      %s178 = sphi 0, %s164
      %s182 = sphi 0, %s182
      %s184 = sphi 0, %s182
      %s185 = sphi 0, %s184
      %s199 = sphi 0, %s185
      %s203 = sphi 0, %s203
      %s205 = sphi 0, %s203
      %s206 = sphi 0, %s205
      %s220 = sphi 0, %s206
      %s224 = sphi 0, %s224
      %s226 = sphi 0, %s224
      %s227 = sphi 0, %s226
      %s241 = sphi 0, %s227
      %s245 = sphi 0, %s245
      %s247 = sphi 0, %s245
      %s248 = sphi 0, %s247
      %s262 = sphi 0, %s248
      %s268 = sphi 0, %s270
      %s271 = sphi 0, %s268
      %s272 = sphi 0, %s271
      %s288 = sphi 0, %s272
    $region4: #{tpu_custom_call.1} parent=1 // loop_header_branch
      %25 = sbr.rel (%p23) target = $region8
    $region5: #{tpu_custom_call.1} parent=1 // loop_body
      %s27 = ssub.s32 %s22, 1
      %s28 = ssub.s32 %s22, 2
      %s29 = sadd.s32 %s22, 1
      %s30 = ssub.s32 %s22, %s29
      %p31 = scmp.eq.s32.totalorder %s30, 0
      %s33 = sadd.s32 %s32, 1
      %s34 = scalar_select %p31, %s32, %s33
      %p37 = pneg %p31
      %p38 = scmp.eq.s32.totalorder %s22, 1
      %p39 = por %p37, %p38
      %p40 = scmp.ne.s32.totalorder %s32, %s35
      %p41 = scmp.eq.s32.totalorder %s22, 0
      %p42 = por %p40, %p41
      %p43 = scmp.ne.s32.totalorder %s32, %s35
      %p44 = scmp.eq.s32.totalorder %s27, 1
      %p45 = por %p43, %p44
      %p46 = scmp.ne.s32.totalorder %s35, %s36
      %p47 = scmp.eq.s32.totalorder %s27, 0
      %p48 = por %p46, %p47
      %p49 = scmp.ne.s32.totalorder %s35, %s36
      %p50 = scmp.eq.s32.totalorder %s28, 1
      %p51 = por %p49, %p50
      %p53 = scmp.ne.s32.totalorder %s36, %s52
      %p54 = scmp.eq.s32.totalorder %s28, 0
      %p55 = por %p53, %p54
      %s57 = sadd.s32 %s56, 1
      %p60 = scmp.eq.s32.totalorder %s22, 1
      %p61 = scmp.ne.s32.totalorder %s56, %s58
      %p62 = scmp.eq.s32.totalorder %s22, 0
      %p63 = por %p61, %p62
      %p64 = scmp.ne.s32.totalorder %s56, %s58
      %p65 = scmp.eq.s32.totalorder %s27, 1
      %p66 = por %p64, %p65
      %p67 = scmp.ne.s32.totalorder %s58, %s59
      %p68 = scmp.eq.s32.totalorder %s27, 0
      %p69 = por %p67, %p68
      %p70 = scmp.ne.s32.totalorder %s58, %s59
      %p71 = scmp.eq.s32.totalorder %s28, 1
      %p72 = por %p70, %p71
      %p74 = scmp.ne.s32.totalorder %s59, %s73
      %p75 = scmp.eq.s32.totalorder %s28, 0
      %p76 = por %p74, %p75
      %s78 = sadd.s32 %s77, 1
      %p81 = scmp.eq.s32.totalorder %s22, 1
      %p82 = scmp.ne.s32.totalorder %s77, %s79
      %p83 = scmp.eq.s32.totalorder %s22, 0
      %p84 = por %p82, %p83
      %p85 = scmp.ne.s32.totalorder %s77, %s79
      %p86 = scmp.eq.s32.totalorder %s27, 1
      %p87 = por %p85, %p86
      %p88 = scmp.ne.s32.totalorder %s79, %s80
      %p89 = scmp.eq.s32.totalorder %s27, 0
      %p90 = por %p88, %p89
      %p91 = scmp.ne.s32.totalorder %s79, %s80
      %p92 = scmp.eq.s32.totalorder %s28, 1
      %p93 = por %p91, %p92
      %p95 = scmp.ne.s32.totalorder %s80, %s94
      %p96 = scmp.eq.s32.totalorder %s28, 0
      %p97 = por %p95, %p96
      %s99 = sadd.s32 %s98, 1
      %p102 = scmp.eq.s32.totalorder %s22, 1
      %p103 = scmp.ne.s32.totalorder %s98, %s100
      %p104 = scmp.eq.s32.totalorder %s22, 0
      %p105 = por %p103, %p104
      %p106 = scmp.ne.s32.totalorder %s98, %s100
      %p107 = scmp.eq.s32.totalorder %s27, 1
      %p108 = por %p106, %p107
      %p109 = scmp.ne.s32.totalorder %s100, %s101
      %p110 = scmp.eq.s32.totalorder %s27, 0
      %p111 = por %p109, %p110
      %p112 = scmp.ne.s32.totalorder %s100, %s101
      %p113 = scmp.eq.s32.totalorder %s28, 1
      %p114 = por %p112, %p113
      %p116 = scmp.ne.s32.totalorder %s101, %s115
      %p117 = scmp.eq.s32.totalorder %s28, 0
      %p118 = por %p116, %p117
      %s120 = sadd.s32 %s119, 1
      %p123 = scmp.eq.s32.totalorder %s22, 1
      %p124 = scmp.ne.s32.totalorder %s119, %s121
      %p125 = scmp.eq.s32.totalorder %s22, 0
      %p126 = por %p124, %p125
      %p127 = scmp.ne.s32.totalorder %s119, %s121
      %p128 = scmp.eq.s32.totalorder %s27, 1
      %p129 = por %p127, %p128
      %p130 = scmp.ne.s32.totalorder %s121, %s122
      %p131 = scmp.eq.s32.totalorder %s27, 0
      %p132 = por %p130, %p131
      %p133 = scmp.ne.s32.totalorder %s121, %s122
      %p134 = scmp.eq.s32.totalorder %s28, 1
      %p135 = por %p133, %p134
      %p137 = scmp.ne.s32.totalorder %s122, %s136
      %p138 = scmp.eq.s32.totalorder %s28, 0
      %p139 = por %p137, %p138
      %s141 = sadd.s32 %s140, 1
      %p144 = scmp.eq.s32.totalorder %s22, 1
      %p145 = scmp.ne.s32.totalorder %s140, %s142
      %p146 = scmp.eq.s32.totalorder %s22, 0
      %p147 = por %p145, %p146
      %p148 = scmp.ne.s32.totalorder %s140, %s142
      %p149 = scmp.eq.s32.totalorder %s27, 1
      %p150 = por %p148, %p149
      %p151 = scmp.ne.s32.totalorder %s142, %s143
      %p152 = scmp.eq.s32.totalorder %s27, 0
      %p153 = por %p151, %p152
      %p154 = scmp.ne.s32.totalorder %s142, %s143
      %p155 = scmp.eq.s32.totalorder %s28, 1
      %p156 = por %p154, %p155
      %p158 = scmp.ne.s32.totalorder %s143, %s157
      %p159 = scmp.eq.s32.totalorder %s28, 0
      %p160 = por %p158, %p159
      %s162 = sadd.s32 %s161, 1
      %p165 = scmp.eq.s32.totalorder %s22, 1
      %p166 = scmp.ne.s32.totalorder %s161, %s163
      %p167 = scmp.eq.s32.totalorder %s22, 0
      %p168 = por %p166, %p167
      %p169 = scmp.ne.s32.totalorder %s161, %s163
      %p170 = scmp.eq.s32.totalorder %s27, 1
      %p171 = por %p169, %p170
      %p172 = scmp.ne.s32.totalorder %s163, %s164
      %p173 = scmp.eq.s32.totalorder %s27, 0
      %p174 = por %p172, %p173
      %p175 = scmp.ne.s32.totalorder %s163, %s164
      %p176 = scmp.eq.s32.totalorder %s28, 1
      %p177 = por %p175, %p176
      %p179 = scmp.ne.s32.totalorder %s164, %s178
      %p180 = scmp.eq.s32.totalorder %s28, 0
      %p181 = por %p179, %p180
      %s183 = sadd.s32 %s182, 1
      %p186 = scmp.eq.s32.totalorder %s22, 1
      %p187 = scmp.ne.s32.totalorder %s182, %s184
      %p188 = scmp.eq.s32.totalorder %s22, 0
      %p189 = por %p187, %p188
      %p190 = scmp.ne.s32.totalorder %s182, %s184
      %p191 = scmp.eq.s32.totalorder %s27, 1
      %p192 = por %p190, %p191
      %p193 = scmp.ne.s32.totalorder %s184, %s185
      %p194 = scmp.eq.s32.totalorder %s27, 0
      %p195 = por %p193, %p194
      %p196 = scmp.ne.s32.totalorder %s184, %s185
      %p197 = scmp.eq.s32.totalorder %s28, 1
      %p198 = por %p196, %p197
      %p200 = scmp.ne.s32.totalorder %s185, %s199
      %p201 = scmp.eq.s32.totalorder %s28, 0
      %p202 = por %p200, %p201
      %s204 = sadd.s32 %s203, 1
      %p207 = scmp.eq.s32.totalorder %s22, 1
      %p208 = scmp.ne.s32.totalorder %s203, %s205
      %p209 = scmp.eq.s32.totalorder %s22, 0
      %p210 = por %p208, %p209
      %p211 = scmp.ne.s32.totalorder %s203, %s205
      %p212 = scmp.eq.s32.totalorder %s27, 1
      %p213 = por %p211, %p212
      %p214 = scmp.ne.s32.totalorder %s205, %s206
      %p215 = scmp.eq.s32.totalorder %s27, 0
      %p216 = por %p214, %p215
      %p217 = scmp.ne.s32.totalorder %s205, %s206
      %p218 = scmp.eq.s32.totalorder %s28, 1
      %p219 = por %p217, %p218
      %p221 = scmp.ne.s32.totalorder %s206, %s220
      %p222 = scmp.eq.s32.totalorder %s28, 0
      %p223 = por %p221, %p222
      %s225 = sadd.s32 %s224, 1
      %p228 = scmp.eq.s32.totalorder %s22, 1
      %p229 = scmp.ne.s32.totalorder %s224, %s226
      %p230 = scmp.eq.s32.totalorder %s22, 0
      %p231 = por %p229, %p230
      %p232 = scmp.ne.s32.totalorder %s224, %s226
      %p233 = scmp.eq.s32.totalorder %s27, 1
      %p234 = por %p232, %p233
      %p235 = scmp.ne.s32.totalorder %s226, %s227
      %p236 = scmp.eq.s32.totalorder %s27, 0
      %p237 = por %p235, %p236
      %p238 = scmp.ne.s32.totalorder %s226, %s227
      %p239 = scmp.eq.s32.totalorder %s28, 1
      %p240 = por %p238, %p239
      %p242 = scmp.ne.s32.totalorder %s227, %s241
      %p243 = scmp.eq.s32.totalorder %s28, 0
      %p244 = por %p242, %p243
      %s246 = sadd.s32 %s245, 1
      %p249 = scmp.eq.s32.totalorder %s22, 1
      %p250 = scmp.ne.s32.totalorder %s245, %s247
      %p251 = scmp.eq.s32.totalorder %s22, 0
      %p252 = por %p250, %p251
      %p253 = scmp.ne.s32.totalorder %s245, %s247
      %p254 = scmp.eq.s32.totalorder %s27, 1
      %p255 = por %p253, %p254
      %p256 = scmp.ne.s32.totalorder %s247, %s248
      %p257 = scmp.eq.s32.totalorder %s27, 0
      %p258 = por %p256, %p257
      %p259 = scmp.ne.s32.totalorder %s247, %s248
      %p260 = scmp.eq.s32.totalorder %s28, 1
      %p261 = por %p259, %p260
      %p263 = scmp.ne.s32.totalorder %s248, %s262
      %p264 = scmp.eq.s32.totalorder %s28, 0
      %p265 = por %p263, %p264
      %s266 = ssub.s32 %s22, %s29
      %p267 = scmp.eq.s32.totalorder %s266, 0
      %s269 = sadd.s32 %s268, 1
      %s270 = scalar_select %p267, %s268, %s269
      %p273 = pneg %p267
      %p274 = scmp.eq.s32.totalorder %s22, 1
      %p275 = por %p273, %p274
      %p276 = scmp.ne.s32.totalorder %s268, %s271
      %p277 = scmp.eq.s32.totalorder %s22, 0
      %p278 = por %p276, %p277
      %p279 = scmp.ne.s32.totalorder %s268, %s271
      %p280 = scmp.eq.s32.totalorder %s27, 1
      %p281 = por %p279, %p280
      %p282 = scmp.ne.s32.totalorder %s271, %s272
      %p283 = scmp.eq.s32.totalorder %s27, 0
      %p284 = por %p282, %p283
      %p285 = scmp.ne.s32.totalorder %s271, %s272
      %p286 = scmp.eq.s32.totalorder %s28, 1
      %p287 = por %p285, %p286
      %p289 = scmp.ne.s32.totalorder %s272, %s288
      %p290 = scmp.eq.s32.totalorder %s28, 0
      %p291 = por %p289, %p290
      %p292 = scmp.le.s32.totalorder 1, %s22
      %p293 = scmp.lt.s32.totalorder %s22, 3
      %p294 = pnand %p292, %p293
      %p295 = pneg %p294
      // Predicated region
      $region9: #{tpu_custom_call.1} parent=5 // pred_check
        _
      $region10: #{tpu_custom_call.1} parent=5 // pred_check_branch
        %297 = sbr.rel (%p294) target = $region12
      $region11: #{tpu_custom_call.1} parent=5 // pred_region
        %s298 = ssub.s32 %s22, 1
        // Predicated region
        $region13: #{tpu_custom_call.1} parent=11 // pred_check
          %p299 = pneg %p69
        $region14: #{tpu_custom_call.1} parent=11 // pred_check_branch
          %301 = sbr.rel (%p299) target = $region16
        $region15: #{tpu_custom_call.1} parent=11 // pred_region
          %s303 = ssub.s32 3328, 3328
          %304 = vsyncadd [#allocation5], %s303
          %s305 = sshll.u32 [#allocation4], 4
          %s306 = int_to_ptr.vmem [resolvable:$true] %s305
          %311 = dma.hbm_to_vmem [thread:$0]  %s1, 3328, %s306, [#allocation5], 256, 256, 16
        $region16: #{tpu_custom_call.1} parent=11 // pred_fallthru
          _
        // Predicated region
        $region17: #{tpu_custom_call.1} parent=11 // pred_check
          %p312 = pneg %p90
        $region18: #{tpu_custom_call.1} parent=11 // pred_check_branch
          %314 = sbr.rel (%p312) target = $region20
        $region19: #{tpu_custom_call.1} parent=11 // pred_region
          _
        $region20: #{tpu_custom_call.1} parent=11 // pred_fallthru
          _
        // Predicated region
        $region21: #{tpu_custom_call.1} parent=11 // pred_check
          %p315 = pneg %p111
        $region22: #{tpu_custom_call.1} parent=11 // pred_check_branch
          %317 = sbr.rel (%p315) target = $region24
        $region23: #{tpu_custom_call.1} parent=11 // pred_region
          _
        $region24: #{tpu_custom_call.1} parent=11 // pred_fallthru
          _
        // Predicated region
        $region25: #{tpu_custom_call.1} parent=11 // pred_check
          %p318 = pneg %p132
        $region26: #{tpu_custom_call.1} parent=11 // pred_check_branch
          %320 = sbr.rel (%p318) target = $region28
        $region27: #{tpu_custom_call.1} parent=11 // pred_region
          _
        $region28: #{tpu_custom_call.1} parent=11 // pred_fallthru
          _
        // Predicated region
        $region29: #{tpu_custom_call.1} parent=11 // pred_check
          %p321 = pneg %p153
        $region30: #{tpu_custom_call.1} parent=11 // pred_check_branch
          %323 = sbr.rel (%p321) target = $region32
        $region31: #{tpu_custom_call.1} parent=11 // pred_region
          _
        $region32: #{tpu_custom_call.1} parent=11 // pred_fallthru
          _
        // Predicated region
        $region33: #{tpu_custom_call.1} parent=11 // pred_check
          %p324 = pneg %p174
        $region34: #{tpu_custom_call.1} parent=11 // pred_check_branch
          %326 = sbr.rel (%p324) target = $region36
        $region35: #{tpu_custom_call.1} parent=11 // pred_region
          %s328 = ssub.s32 512, 512
          %329 = vsyncadd [#allocation8], %s328
          %s330 = sshll.u32 [#allocation7], 4
          %s331 = int_to_ptr.vmem [resolvable:$true] %s330
          %336 = dma.hbm_to_vmem [thread:$0]  %s6, 512, %s331, [#allocation8], 128, 128, 8
        $region36: #{tpu_custom_call.1} parent=11 // pred_fallthru
          _
        // Predicated region
        $region37: #{tpu_custom_call.1} parent=11 // pred_check
          %p337 = pneg %p195
        $region38: #{tpu_custom_call.1} parent=11 // pred_check_branch
          %339 = sbr.rel (%p337) target = $region40
        $region39: #{tpu_custom_call.1} parent=11 // pred_region
          _
        $region40: #{tpu_custom_call.1} parent=11 // pred_fallthru
          _
        // Predicated region
        $region41: #{tpu_custom_call.1} parent=11 // pred_check
          %p340 = pneg %p216
        $region42: #{tpu_custom_call.1} parent=11 // pred_check_branch
          %342 = sbr.rel (%p340) target = $region44
        $region43: #{tpu_custom_call.1} parent=11 // pred_region
          _
        $region44: #{tpu_custom_call.1} parent=11 // pred_fallthru
          _
        // Predicated region
        $region45: #{tpu_custom_call.1} parent=11 // pred_check
          %p343 = pneg %p237
        $region46: #{tpu_custom_call.1} parent=11 // pred_check_branch
          %345 = sbr.rel (%p343) target = $region48
        $region47: #{tpu_custom_call.1} parent=11 // pred_region
          %s347 = ssub.s32 512, 512
          %348 = vsyncadd [#allocation8], %s347
          %s349 = sshll.u32 [#allocation9], 4
          %s350 = int_to_ptr.vmem [resolvable:$true] %s349
          %355 = dma.hbm_to_vmem [thread:$0]  %s9, 512, %s350, [#allocation8], 128, 128, 8
        $region48: #{tpu_custom_call.1} parent=11 // pred_fallthru
          _
        // Predicated region
        $region49: #{tpu_custom_call.1} parent=11 // pred_check
          %p356 = pneg %p258
        $region50: #{tpu_custom_call.1} parent=11 // pred_check_branch
          %358 = sbr.rel (%p356) target = $region52
        $region51: #{tpu_custom_call.1} parent=11 // pred_region
          _
        $region52: #{tpu_custom_call.1} parent=11 // pred_fallthru
          _
      $region12: #{tpu_custom_call.1} parent=5 // pred_fallthru
        _
      %p359 = scmp.lt.s32.totalorder %s22, 2
      // Predicated region
      $region53: #{tpu_custom_call.1} parent=5 // pred_check
        %p360 = pneg %p359
      $region54: #{tpu_custom_call.1} parent=5 // pred_check_branch
        %362 = sbr.rel (%p360) target = $region56
      $region55: #{tpu_custom_call.1} parent=5 // pred_region
        // Predicated region
        $region57: #{tpu_custom_call.1} parent=55 // pred_check
          %p363 = pneg %p42
        $region58: #{tpu_custom_call.1} parent=55 // pred_check_branch
          %365 = sbr.rel (%p363) target = $region60
        $region59: #{tpu_custom_call.1} parent=55 // pred_region
          %p366 = scmp.lt.s32.totalorder %s22, 1
          %s367 = scalar_select %p366, %s22, 1
          %s368 = smul.addr %s367, 8
          %s369 = smul.addr %s368, 8
          %s370 = scalar_lea.vmem %s0, %s369
        $region60: #{tpu_custom_call.1} parent=55 // pred_fallthru
          _
      $region56: #{tpu_custom_call.1} parent=5 // pred_fallthru
        _
      %p371 = scmp.le.s32.totalorder 1, %s22
      %p372 = scmp.lt.s32.totalorder %s22, 3
      %p373 = pnand %p371, %p372
      %p374 = pneg %p373
      // Predicated region
      $region61: #{tpu_custom_call.1} parent=5 // pred_check
        _
      $region62: #{tpu_custom_call.1} parent=5 // pred_check_branch
        %376 = sbr.rel (%p373) target = $region64
      $region63: #{tpu_custom_call.1} parent=5 // pred_region
        %s377 = ssub.s32 %s22, 1
        // Predicated region
        $region65: #{tpu_custom_call.1} parent=63 // pred_check
          %p378 = pneg %p69
        $region66: #{tpu_custom_call.1} parent=63 // pred_check_branch
          %380 = sbr.rel (%p378) target = $region68
        $region67: #{tpu_custom_call.1} parent=63 // pred_region
          %381 = dma.done [#allocation5], 3328
        $region68: #{tpu_custom_call.1} parent=63 // pred_fallthru
          _
        // Predicated region
        $region69: #{tpu_custom_call.1} parent=63 // pred_check
          %p382 = pneg %p174
        $region70: #{tpu_custom_call.1} parent=63 // pred_check_branch
          %384 = sbr.rel (%p382) target = $region72
        $region71: #{tpu_custom_call.1} parent=63 // pred_region
          %385 = dma.done [#allocation8], 512
        $region72: #{tpu_custom_call.1} parent=63 // pred_fallthru
          _
        // Predicated region
        $region73: #{tpu_custom_call.1} parent=63 // pred_check
          %p386 = pneg %p237
        $region74: #{tpu_custom_call.1} parent=63 // pred_check_branch
          %388 = sbr.rel (%p386) target = $region76
        $region75: #{tpu_custom_call.1} parent=63 // pred_region
          %389 = dma.done [#allocation8], 512
        $region76: #{tpu_custom_call.1} parent=63 // pred_fallthru
          _
        %p390 = scmp.lt.s32.totalorder %s27, 1
        %s391 = scalar_select %p390, %s27, 1
        %s392 = smul.addr %s391, 8
        %s393 = smul.addr %s392, 8
        %s394 = scalar_lea.vmem %s0, %s393
        %p395 = pneg %p48
        %p396 = pneg %p45
        %p397 = pneg %p69
        %p398 = pneg %p66
        %p399 = pneg %p90
        %p400 = pneg %p87
        %p401 = pneg %p111
        %p402 = pneg %p108
        %p403 = pneg %p132
        %p404 = pneg %p129
        %p405 = pneg %p153
        %p406 = pneg %p150
        %p407 = pneg %p174
        %p408 = pneg %p171
        %p409 = pneg %p195
        %p410 = pneg %p192
        %p411 = pneg %p216
        %p412 = pneg %p213
        %p413 = pneg %p237
        %p414 = pneg %p234
        %p415 = pneg %p258
        %p416 = pneg %p255
        %p417 = pneg %p284
        %p418 = pneg %p281
        %s419 = sand.u32 %s271, 1
        %s420 = scalar_lea.sflag [#allocation6], %s419
        %s421 = sand.u32 %s271, 1
        %s422 = smul.addr %s421, 64
        %s423 = scalar_lea.vmem [#allocation10], %s422
        %p424 = scmp.lt.s32.totalorder %s27, 1
        %s425 = scalar_select %p424, %s27, 1
        %s426 = smul.addr %s425, 8
        %s427 = smul.addr %s426, 8
        %s428 = scalar_lea.vmem %s0, %s427
        %v429 = vld [vmem:[%s428] sm:$0xff]
        %v430 = vld [vmem:[%s428 + $0x8] sm:$0xff]
        %v431 = vld [vmem:[%s428 + $0x10] sm:$0xff]
        %v432 = vld [vmem:[%s428 + $0x18] sm:$0xff]
        %v433 = vld [vmem:[%s428 + $0x20] sm:$0xff]
        %v434 = vld [vmem:[%s428 + $0x28] sm:$0xff]
        %v435 = vld [vmem:[%s428 + $0x30] sm:$0xff]
        %v436 = vld [vmem:[%s428 + $0x38] sm:$0xff]
        %v437 = vadd.f32 %v429, %v430
        %438 = vadd.xlane.f32.xlu0 %v437
        %v439 = vpop.xlane.xlu0 %438
        %v440 = vadd.f32 %v431, %v432
        %441 = vadd.xlane.f32.xlu0 %v440
        %v442 = vpop.xlane.xlu0 %441
        %v443 = vadd.f32 %v433, %v434
        %444 = vadd.xlane.f32.xlu0 %v443
        %v445 = vpop.xlane.xlu0 %444
        %v446 = vadd.f32 %v435, %v436
        %447 = vadd.xlane.f32.xlu0 %v446
        %v448 = vpop.xlane.xlu0 %447
        %v449 = vrcp.pop 256.0
        %v450 = vmul.f32 %v439, %v449
        %v451 = vmul.f32 %v442, %v449
        %v452 = vmul.f32 %v445, %v449
        %v453 = vmul.f32 %v448, %v449
        %v454 = vmax.f32 %v429, %v430
        %455 = vmax.xlane.f32.xlu0 %v454
        %v456 = vpop.xlane.xlu0 %455
        %v457 = vmax.f32 %v431, %v432
        %458 = vmax.xlane.f32.xlu0 %v457
        %v459 = vpop.xlane.xlu0 %458
        %v460 = vmax.f32 %v433, %v434
        %461 = vmax.xlane.f32.xlu0 %v460
        %v462 = vpop.xlane.xlu0 %461
        %v463 = vmax.f32 %v435, %v436
        %464 = vmax.xlane.f32.xlu0 %v463
        %v465 = vpop.xlane.xlu0 %464
        %v466 = vlaneseq
        %v467 = vand.u32 %v466, 127
        %vm468 = vcmp.eq.s32.totalorder %v467, 0
        %v469 = vsel %vm468, 1, 0
        %vm470 = vcmp.eq.s32.totalorder %v469, 1
        %v471 = vsel %vm470, %v450, %v456
        %v472 = vsel %vm470, %v451, %v459
        %v473 = vsel %vm470, %v452, %v462
        %v474 = vsel %vm470, %v453, %v465
        %v475 = vld [vmem:[%s2] sm:$0x3]
        %v476 = vld [vmem:[%s3] sm:$0x3]
        %478 = vset.pattern.permute.xlu0 0
        %479 = vperm.xlu0 %478, %v476
        %v480 = vpop.permute.xlu0 %479
        %vm482 = vcmask 261120
        %v484 = vsel %vm482, %v475, 0
        %486 = vmatprep.subr.mxu0 0.0
        %487 = vmatpush1.msra.mxu0 %v471
        %488 = vmatprep.subr.mxu0 0.0
        %489 = vmatpush1.msra.mxu0 %v472
        %490 = vmatprep.subr.mxu0 0.0
        %491 = vmatpush1.msra.mxu0 %v473
        %492 = vmatprep.subr.mxu0 0.0
        %493 = vmatpush1.msra.mxu0 %v474
        %494 = vmatprep.subr.mxu0 0.0
        %495 = vmatpush1.msra.mxu0 0.0
        %496 = vmatprep.subr.mxu0 0.0
        %497 = vmatpush1.msra.mxu0 0.0
        %498 = vmatprep.subr.mxu0 0.0
        %499 = vmatpush1.msra.mxu0 0.0
        %500 = vmatprep.subr.mxu0 0.0
        %501 = vmatpush1.msra.mxu0 0.0
        %502 = vmatprep.subr.mxu0 0.0
        %503 = vmatpush1.msra.mxu0 0.0
        %504 = vmatprep.subr.mxu0 0.0
        %505 = vmatpush1.msra.mxu0 0.0
        %506 = vmatprep.subr.mxu0 0.0
        %507 = vmatpush1.msra.mxu0 0.0
        %508 = vmatprep.subr.mxu0 0.0
        %509 = vmatpush1.msra.mxu0 0.0
        %510 = vmatprep.subr.mxu0 0.0
        %511 = vmatpush1.msra.mxu0 0.0
        %512 = vmatprep.subr.mxu0 0.0
        %513 = vmatpush1.msra.mxu0 0.0
        %514 = vmatprep.subr.mxu0 0.0
        %515 = vmatpush1.msra.mxu0 0.0
        %516 = vmatprep.subr.mxu0 0.0
        %517 = vmatpush1.msra.mxu0 0.0
        %518 = vmatprep.subr.mxu0 0.0
        %519 = vmatpush1.msra.mxu0 0.0
        %520 = vmatprep.subr.mxu0 0.0
        %521 = vmatpush1.msra.mxu0 0.0
        %522 = vmatprep.subr.mxu0 0.0
        %523 = vmatpush1.msra.mxu0 0.0
        %524 = vmatprep.subr.mxu0 0.0
        %525 = vmatpush1.msra.mxu0 0.0
        %526 = vmatprep.subr.mxu0 0.0
        %527 = vmatpush1.msra.mxu0 0.0
        %528 = vmatprep.subr.mxu0 0.0
        %529 = vmatpush1.msra.mxu0 0.0
        %530 = vmatprep.subr.mxu0 0.0
        %531 = vmatpush1.msra.mxu0 0.0
        %532 = vmatprep.subr.mxu0 0.0
        %533 = vmatpush1.msra.mxu0 0.0
        %534 = vmatprep.subr.mxu0 0.0
        %535 = vmatpush1.msra.mxu0 0.0
        %536 = vmatprep.subr.mxu0 0.0
        %537 = vmatpush1.msra.mxu0 0.0
        %538 = vmatprep.subr.mxu0 0.0
        %539 = vmatpush1.msra.mxu0 0.0
        %540 = vmatprep.subr.mxu0 0.0
        %541 = vmatpush1.msra.mxu0 0.0
        %542 = vmatprep.subr.mxu0 0.0
        %543 = vmatpush1.msra.mxu0 0.0
        %544 = vmatprep.subr.mxu0 0.0
        %545 = vmatpush1.msra.mxu0 0.0
        %546 = vmatprep.subr.mxu0 0.0
        %547 = vmatpush1.msra.mxu0 0.0
        %548 = vmatprep.subr.mxu0 0.0
        %549 = vmatpush1.msra.mxu0 0.0
        %550 = vmatprep.mubr.f32.mxu0 0.0
        %551 = vmatmul.mubr.f32.gmra.mrb[0].mxu0 %v484
        %v552 = vpop.f32.mrb[0].mxu0
        %v553 = vadd.f32 %v480, %v552
        %v554 = vpop.f32.mrb[0].mxu0
        %555 = vdwg.mxu0
        %v556 = vmax.f32 %v553, 0.0
        %v557 = vld [vmem:[%s4] sm:$0xff]
        %v558 = vld [vmem:[%s4 + $0x8] sm:$0xff]
        %v559 = vld [vmem:[%s4 + $0x10] sm:$0xff]
        %v560 = vld [vmem:[%s4 + $0x18] sm:$0xff]
        %v561 = vld [vmem:[%s5] sm:$0xff]
        %v562 = vld [vmem:[%s5 + $0x8] sm:$0xff]
        %v563 = vld [vmem:[%s5 + $0x10] sm:$0xff]
        %v564 = vld [vmem:[%s5 + $0x18] sm:$0xff]
        %566 = vset.pattern.permute.xlu0 0
        %567 = vperm.xlu0 %566, %v561
        %v568 = vpop.permute.xlu0 %567
        %571 = vset.pattern.permute.xlu0 0
        %572 = vperm.xlu0 %571, %v562
        %v573 = vpop.permute.xlu0 %572
        %576 = vset.pattern.permute.xlu0 0
        %577 = vperm.xlu0 %576, %v563
        %v578 = vpop.permute.xlu0 %577
        %581 = vset.pattern.permute.xlu0 0
        %582 = vperm.xlu0 %581, %v564
        %v583 = vpop.permute.xlu0 %582
        %vm585 = vcmask 15360
        %v587 = vsel %vm585, %v557, 0
        %v590 = vsel %vm585, %v558, 0
        %v593 = vsel %vm585, %v559, 0
        %v596 = vsel %vm585, %v560, 0
        %vm598 = vcmask 1041408
        %v600 = vsel %vm598, %v556, 0
        %602 = vmatprep.subr.mxu0 0.0
        %603 = vmatpush1.msra.mxu0 %v600
        %604 = vmatprep.subr.mxu0 0.0
        %605 = vmatpush1.msra.mxu0 0.0
        %606 = vmatprep.subr.mxu0 0.0
        %607 = vmatpush1.msra.mxu0 0.0
        %608 = vmatprep.subr.mxu0 0.0
        %609 = vmatpush1.msra.mxu0 0.0
        %610 = vmatprep.subr.mxu0 0.0
        %611 = vmatpush1.msra.mxu0 0.0
        %612 = vmatprep.subr.mxu0 0.0
        %613 = vmatpush1.msra.mxu0 0.0
        %614 = vmatprep.subr.mxu0 0.0
        %615 = vmatpush1.msra.mxu0 0.0
        %616 = vmatprep.subr.mxu0 0.0
        %617 = vmatpush1.msra.mxu0 0.0
        %618 = vmatprep.subr.mxu0 0.0
        %619 = vmatpush1.msra.mxu0 0.0
        %620 = vmatprep.subr.mxu0 0.0
        %621 = vmatpush1.msra.mxu0 0.0
        %622 = vmatprep.subr.mxu0 0.0
        %623 = vmatpush1.msra.mxu0 0.0
        %624 = vmatprep.subr.mxu0 0.0
        %625 = vmatpush1.msra.mxu0 0.0
        %626 = vmatprep.subr.mxu0 0.0
        %627 = vmatpush1.msra.mxu0 0.0
        %628 = vmatprep.subr.mxu0 0.0
        %629 = vmatpush1.msra.mxu0 0.0
        %630 = vmatprep.subr.mxu0 0.0
        %631 = vmatpush1.msra.mxu0 0.0
        %632 = vmatprep.subr.mxu0 0.0
        %633 = vmatpush1.msra.mxu0 0.0
        %634 = vmatprep.subr.mxu0 0.0
        %635 = vmatpush1.msra.mxu0 0.0
        %636 = vmatprep.subr.mxu0 0.0
        %637 = vmatpush1.msra.mxu0 0.0
        %638 = vmatprep.subr.mxu0 0.0
        %639 = vmatpush1.msra.mxu0 0.0
        %640 = vmatprep.subr.mxu0 0.0
        %641 = vmatpush1.msra.mxu0 0.0
        %642 = vmatprep.subr.mxu0 0.0
        %643 = vmatpush1.msra.mxu0 0.0
        %644 = vmatprep.subr.mxu0 0.0
        %645 = vmatpush1.msra.mxu0 0.0
        %646 = vmatprep.subr.mxu0 0.0
        %647 = vmatpush1.msra.mxu0 0.0
        %648 = vmatprep.subr.mxu0 0.0
        %649 = vmatpush1.msra.mxu0 0.0
        %650 = vmatprep.subr.mxu0 0.0
        %651 = vmatpush1.msra.mxu0 0.0
        %652 = vmatprep.subr.mxu0 0.0
        %653 = vmatpush1.msra.mxu0 0.0
        %654 = vmatprep.subr.mxu0 0.0
        %655 = vmatpush1.msra.mxu0 0.0
        %656 = vmatprep.subr.mxu0 0.0
        %657 = vmatpush1.msra.mxu0 0.0
        %658 = vmatprep.subr.mxu0 0.0
        %659 = vmatpush1.msra.mxu0 0.0
        %660 = vmatprep.subr.mxu0 0.0
        %661 = vmatpush1.msra.mxu0 0.0
        %662 = vmatprep.subr.mxu0 0.0
        %663 = vmatpush1.msra.mxu0 0.0
        %664 = vmatprep.subr.mxu0 0.0
        %665 = vmatpush1.msra.mxu0 0.0
        %666 = vmatprep.mubr.f32.mxu0 0.0
        %667 = vmatmul.mubr.f32.gmra.mrb[0].mxu0 %v587
        %v668 = vpop.f32.mrb[0].mxu0
        %v669 = vadd.f32 %v568, %v668
        %v670 = vpop.f32.mrb[0].mxu0
        %671 = vmatprep.mubr.f32.mxu0 0.0
        %672 = vmatmul.mubr.f32.gmra.mrb[0].mxu0 %v590
        %v673 = vpop.f32.mrb[0].mxu0
        %v674 = vadd.f32 %v573, %v673
        %v675 = vpop.f32.mrb[0].mxu0
        %676 = vmatprep.mubr.f32.mxu0 0.0
        %677 = vmatmul.mubr.f32.gmra.mrb[0].mxu0 %v593
        %v678 = vpop.f32.mrb[0].mxu0
        %v679 = vadd.f32 %v578, %v678
        %v680 = vpop.f32.mrb[0].mxu0
        %681 = vmatprep.mubr.f32.mxu0 0.0
        %682 = vmatmul.mubr.f32.gmra.mrb[0].mxu0 %v596
        %v683 = vpop.f32.mrb[0].mxu0
        %v684 = vadd.f32 %v583, %v683
        %v685 = vpop.f32.mrb[0].mxu0
        %686 = vdwg.mxu0
        %v687 = vsel %vm585, %v669, 0.0
        %688 = vadd.xlane.f32.xlu0 %v687
        %v689 = vpop.xlane.xlu0 %688
        %v690 = vsel %vm585, %v674, 0.0
        %691 = vadd.xlane.f32.xlu0 %v690
        %v692 = vpop.xlane.xlu0 %691
        %v693 = vsel %vm585, %v679, 0.0
        %694 = vadd.xlane.f32.xlu0 %v693
        %v695 = vpop.xlane.xlu0 %694
        %v696 = vsel %vm585, %v684, 0.0
        %697 = vadd.xlane.f32.xlu0 %v696
        %v698 = vpop.xlane.xlu0 %697
        %v699 = vxor.u32 %v689, 2147483648
        %v700 = vxor.u32 %v692, 2147483648
        %v701 = vxor.u32 %v695, 2147483648
        %v702 = vxor.u32 %v698, 2147483648
        %v703 = vmul.f32 %v699, 1.442695
        %v704 = vpow.pop %v703
        %v705 = vmul.f32 %v700, 1.442695
        %v706 = vpow.pop %v705
        %v707 = vmul.f32 %v701, 1.442695
        %v708 = vpow.pop %v707
        %v709 = vmul.f32 %v702, 1.442695
        %v710 = vpow.pop %v709
        %v711 = vadd.f32 %v704, 1.0
        %v712 = vadd.f32 %v706, 1.0
        %v713 = vadd.f32 %v708, 1.0
        %v714 = vadd.f32 %v710, 1.0
        %v715 = vrcp.pop %v711
        %v716 = vmul.f32 1.0, %v715
        %v717 = vrcp.pop %v712
        %v718 = vmul.f32 1.0, %v717
        %v719 = vrcp.pop %v713
        %v720 = vmul.f32 1.0, %v719
        %v721 = vrcp.pop %v714
        %v722 = vmul.f32 1.0, %v721
        %v723 = vld [vmem:[%s8] sm:$0xff]
        %v724 = vld [vmem:[%s8 + $0x8] sm:$0xff]
        %v725 = vld [vmem:[%s8 + $0x10] sm:$0xff]
        %v726 = vld [vmem:[%s8 + $0x18] sm:$0xff]
        %v728 = vsel %vm482, %v723, 0
        %v731 = vsel %vm482, %v724, 0
        %v734 = vsel %vm482, %v725, 0
        %v737 = vsel %vm482, %v726, 0
        %739 = vmatprep.subr.mxu0 0.0
        %740 = vmatpush1.msra.mxu0 %v716
        %741 = vmatprep.subr.mxu0 0.0
        %742 = vmatpush1.msra.mxu0 %v718
        %743 = vmatprep.subr.mxu0 0.0
        %744 = vmatpush1.msra.mxu0 %v720
        %745 = vmatprep.subr.mxu0 0.0
        %746 = vmatpush1.msra.mxu0 %v722
        %747 = vmatprep.subr.mxu0 0.0
        %748 = vmatpush1.msra.mxu0 0.0
        %749 = vmatprep.subr.mxu0 0.0
        %750 = vmatpush1.msra.mxu0 0.0
        %751 = vmatprep.subr.mxu0 0.0
        %752 = vmatpush1.msra.mxu0 0.0
        %753 = vmatprep.subr.mxu0 0.0
        %754 = vmatpush1.msra.mxu0 0.0
        %755 = vmatprep.subr.mxu0 0.0
        %756 = vmatpush1.msra.mxu0 0.0
        %757 = vmatprep.subr.mxu0 0.0
        %758 = vmatpush1.msra.mxu0 0.0
        %759 = vmatprep.subr.mxu0 0.0
        %760 = vmatpush1.msra.mxu0 0.0
        %761 = vmatprep.subr.mxu0 0.0
        %762 = vmatpush1.msra.mxu0 0.0
        %763 = vmatprep.subr.mxu0 0.0
        %764 = vmatpush1.msra.mxu0 0.0
        %765 = vmatprep.subr.mxu0 0.0
        %766 = vmatpush1.msra.mxu0 0.0
        %767 = vmatprep.subr.mxu0 0.0
        %768 = vmatpush1.msra.mxu0 0.0
        %769 = vmatprep.subr.mxu0 0.0
        %770 = vmatpush1.msra.mxu0 0.0
        %771 = vmatprep.subr.mxu0 0.0
        %772 = vmatpush1.msra.mxu0 0.0
        %773 = vmatprep.subr.mxu0 0.0
        %774 = vmatpush1.msra.mxu0 0.0
        %775 = vmatprep.subr.mxu0 0.0
        %776 = vmatpush1.msra.mxu0 0.0
        %777 = vmatprep.subr.mxu0 0.0
        %778 = vmatpush1.msra.mxu0 0.0
        %779 = vmatprep.subr.mxu0 0.0
        %780 = vmatpush1.msra.mxu0 0.0
        %781 = vmatprep.subr.mxu0 0.0
        %782 = vmatpush1.msra.mxu0 0.0
        %783 = vmatprep.subr.mxu0 0.0
        %784 = vmatpush1.msra.mxu0 0.0
        %785 = vmatprep.subr.mxu0 0.0
        %786 = vmatpush1.msra.mxu0 0.0
        %787 = vmatprep.subr.mxu0 0.0
        %788 = vmatpush1.msra.mxu0 0.0
        %789 = vmatprep.subr.mxu0 0.0
        %790 = vmatpush1.msra.mxu0 0.0
        %791 = vmatprep.subr.mxu0 0.0
        %792 = vmatpush1.msra.mxu0 0.0
        %793 = vmatprep.subr.mxu0 0.0
        %794 = vmatpush1.msra.mxu0 0.0
        %795 = vmatprep.subr.mxu0 0.0
        %796 = vmatpush1.msra.mxu0 0.0
        %797 = vmatprep.subr.mxu0 0.0
        %798 = vmatpush1.msra.mxu0 0.0
        %799 = vmatprep.subr.mxu0 0.0
        %800 = vmatpush1.msra.mxu0 0.0
        %801 = vmatprep.subr.mxu0 0.0
        %802 = vmatpush1.msra.mxu0 0.0
        %803 = vmatprep.mubr.f32.mxu0 0.0
        %804 = vmatmul.mubr.f32.gmra.mrb[0].mxu0 %v728
        %v805 = vpop.f32.mrb[0].mxu0
        %v806 = vadd.f32 0.0, %v805
        %v807 = vpop.f32.mrb[0].mxu0
        %808 = vmatprep.mubr.f32.mxu0 0.0
        %809 = vmatmul.mubr.f32.gmra.mrb[0].mxu0 %v731
        %v810 = vpop.f32.mrb[0].mxu0
        %v811 = vadd.f32 0.0, %v810
        %v812 = vpop.f32.mrb[0].mxu0
        %813 = vmatprep.mubr.f32.mxu0 0.0
        %814 = vmatmul.mubr.f32.gmra.mrb[0].mxu0 %v734
        %v815 = vpop.f32.mrb[0].mxu0
        %v816 = vadd.f32 0.0, %v815
        %v817 = vpop.f32.mrb[0].mxu0
        %818 = vmatprep.mubr.f32.mxu0 0.0
        %819 = vmatmul.mubr.f32.gmra.mrb[0].mxu0 %v737
        %v820 = vpop.f32.mrb[0].mxu0
        %v821 = vadd.f32 0.0, %v820
        %v822 = vpop.f32.mrb[0].mxu0
        %823 = vdwg.mxu0
        %v824 = vadd.f32 %v429, %v431
        %v825 = vadd.f32 %v824, %v433
        %v826 = vadd.f32 %v825, %v435
        %v827 = vrot.slane %v826, 4
        %v828 = vadd.f32 %v826, %v827
        %v829 = vrot.slane %v828, 2
        %v830 = vadd.f32 %v828, %v829
        %v831 = vrot.slane %v830, 1
        %v832 = vadd.f32 %v830, %v831
        %v833 = vadd.f32 %v430, %v432
        %v834 = vadd.f32 %v833, %v434
        %v835 = vadd.f32 %v834, %v436
        %v836 = vrot.slane %v835, 4
        %v837 = vadd.f32 %v835, %v836
        %v838 = vrot.slane %v837, 2
        %v839 = vadd.f32 %v837, %v838
        %v840 = vrot.slane %v839, 1
        %v841 = vadd.f32 %v839, %v840
        %v842 = vrcp.pop 32.0
        %v843 = vmul.f32 %v832, %v842
        %v844 = vmul.f32 %v841, %v842
        %v845 = vmax.f32 %v429, %v433
        %v846 = vmax.f32 %v431, %v435
        %v847 = vmax.f32 %v845, %v846
        %v848 = vrot.slane %v847, 4
        %v849 = vmax.f32 %v847, %v848
        %v850 = vrot.slane %v849, 2
        %v851 = vmax.f32 %v849, %v850
        %v852 = vrot.slane %v851, 1
        %v853 = vmax.f32 %v851, %v852
        %v854 = vmax.f32 %v430, %v434
        %v855 = vmax.f32 %v432, %v436
        %v856 = vmax.f32 %v854, %v855
        %v857 = vrot.slane %v856, 4
        %v858 = vmax.f32 %v856, %v857
        %v859 = vrot.slane %v858, 2
        %v860 = vmax.f32 %v858, %v859
        %v861 = vrot.slane %v860, 1
        %v862 = vmax.f32 %v860, %v861
        %863 = vst [vmem:[#allocation2] sm:$0xf] 0.0
        %864 = vst [vmem:[#allocation2 + $0x8] sm:$0xf] 0.0
        %v865 = vlaneseq
        %v866 = vshrl.u32 %v865, 7
        %vm867 = vcmp.eq.s32.totalorder %v866, 0
        %v868 = vsel %vm867, 1, 0
        %vm869 = vcmp.eq.s32.totalorder %v868, 1
        %v870 = vsel %vm869, %v843, %v853
        %v871 = vsel %vm869, %v844, %v862
        %v874 = vcombine.low %v870, %v871
        %v876 = vunpack.c.l.s4 1983009808
        %v877 = vunpack.c.0.s8 %v876
        %v878 = vlaneseq
        %v879 = vshrl.u32 %v878, 7
        %v880 = vsub.s32 %v877, %v879
        %v881 = vrot.slane %v874, %v880
        %883 = vst [vmem:[#allocation2 + $0x4] sm:$0xf] %v881
        %v884 = vld [vmem:[#allocation2] sm:$0x3f]
        %v886 = vcombine.high %v884, %v884
        %v888 = vunpack.c.l.s4 1983009808
        %v889 = vunpack.c.0.s8 %v888
        %v890 = vlaneseq
        %v891 = vshrl.u32 %v890, 7
        %v892 = vsub.s32 %v889, %v891
        %v893 = vrot.slane %v884, %v892
        %v895 = vunpack.c.l.s4 1983009808
        %v896 = vunpack.c.0.s8 %v895
        %v897 = vlaneseq
        %v898 = vshrl.u32 %v897, 7
        %v899 = vsub.s32 %v896, %v898
        %v900 = vrot.slane %v886, %v899
        %v901 = vcombine.high %v893, %v893
        %v905 = vcombine.low %v884, %v884
        %v907 = vunpack.c.l.s4 1983009808
        %v908 = vunpack.c.0.s8 %v907
        %v909 = vlaneseq
        %v910 = vshrl.u32 %v909, 7
        %v911 = vsub.s32 %v908, %v910
        %v912 = vrot.slane %v905, %v911
        %v913 = vcombine.high %v912, %v912
        %914 = vrot.lane.b32.xlu0 %v912, 125
        %v915 = vpop.permute.xlu0 %914
        %916 = vrot.lane.b32.xlu0 %v913, 125
        %v917 = vpop.permute.xlu0 %916
        %918 = vrot.lane.b32.xlu0 %v893, 125
        %v919 = vpop.permute.xlu0 %918
        %vm920 = vcmask 1022976
        %v921 = vsel %vm920, %v915, %v917
        %v922 = vsel %vm920, %v917, %v919
        %v926 = vcombine.low %v893, %v893
        %v927 = vcombine.low %v900, %v900
        %928 = vrot.lane.b32.xlu0 %v926, 122
        %v929 = vpop.permute.xlu0 %928
        %930 = vrot.lane.b32.xlu0 %v893, 122
        %v931 = vpop.permute.xlu0 %930
        %932 = vrot.lane.b32.xlu0 %v927, 122
        %v933 = vpop.permute.xlu0 %932
        %vm934 = vcmask 998400
        %v935 = vsel %vm934, %v929, %v931
        %v936 = vsel %vm934, %v931, %v933
        %v940 = vcombine.low %v912, %v912
        %941 = vrot.lane.b32.xlu0 %v940, 119
        %v942 = vpop.permute.xlu0 %941
        %943 = vrot.lane.b32.xlu0 %v912, 119
        %v944 = vpop.permute.xlu0 %943
        %945 = vrot.lane.b32.xlu0 %v926, 119
        %v946 = vpop.permute.xlu0 %945
        %vm947 = vcmask 973824
        %v948 = vsel %vm947, %v942, %v944
        %v949 = vsel %vm947, %v944, %v946
        %v953 = vsel %vm598, %v893, %v921
        %v954 = vsel %vm598, %v901, %v922
        %v955 = vsel %vm598, %v900, %v919
        %vm956 = vcmask 1043456
        %v957 = vsel %vm956, %v953, %v935
        %v958 = vsel %vm956, %v954, %v936
        %v959 = vsel %vm956, %v955, %v933
        %vm960 = vcmask 1045504
        %v961 = vsel %vm960, %v957, %v948
        %v962 = vsel %vm960, %v958, %v949
        %v963 = vsel %vm960, %v959, %v946
        %v964 = vld [vmem:[#allocation4] sm:$0xff]
        %v965 = vld [vmem:[#allocation4 + $0x8] sm:$0xff]
        %968 = vrot.lane.b32.xlu0 %v964, 103
        %v969 = vpop.permute.xlu0 %968
        %970 = vrot.lane.b32.xlu0 %v965, 103
        %v971 = vpop.permute.xlu0 %970
        %vm972 = vcmask 842752
        %v973 = vsel %vm972, %v969, %v971
        %v977 = vmul.f32 %v961, %v969
        %v978 = vmul.f32 %v962, %v973
        %v979 = vmul.f32 %v963, %v971
        %983 = vrot.lane.b32.xlu0 %v977, 25
        %v984 = vpop.permute.xlu0 %983
        %985 = vrot.lane.b32.xlu0 %v978, 25
        %v986 = vpop.permute.xlu0 %985
        %987 = vrot.lane.b32.xlu0 %v979, 25
        %v988 = vpop.permute.xlu0 %987
        %vm989 = vcmask 203776
        %v990 = vsel %vm989, %v984, %v986
        %v991 = vsel %vm989, %v986, %v988
        %994 = vst [vmem:[#allocation3] sm:$0xff] %v990
        %995 = vst [vmem:[#allocation3 + $0x8] sm:$0xff] %v991
        %v996 = vld [vmem:[#allocation2] sm:$0x3f]
        %v997 = vld [vmem:[#allocation2 + $0x2] sm:$0x3f]
        %v999 = vcombine.high %v996, %v996
        %v1001 = vunpack.c.l.s4 1983009808
        %v1002 = vunpack.c.0.s8 %v1001
        %v1003 = vlaneseq
        %v1004 = vshrl.u32 %v1003, 7
        %v1005 = vsub.s32 %v1002, %v1004
        %v1006 = vrot.slane %v996, %v1005
        %v1008 = vunpack.c.l.s4 1983009808
        %v1009 = vunpack.c.0.s8 %v1008
        %v1010 = vlaneseq
        %v1011 = vshrl.u32 %v1010, 7
        %v1012 = vsub.s32 %v1009, %v1011
        %v1013 = vrot.slane %v999, %v1012
        %v1014 = vcombine.high %v1006, %v1006
        %v1018 = vcombine.low %v996, %v996
        %v1020 = vunpack.c.l.s4 1983009808
        %v1021 = vunpack.c.0.s8 %v1020
        %v1022 = vlaneseq
        %v1023 = vshrl.u32 %v1022, 7
        %v1024 = vsub.s32 %v1021, %v1023
        %v1025 = vrot.slane %v1018, %v1024
        %v1026 = vcombine.high %v1025, %v1025
        %1027 = vrot.lane.b32.xlu0 %v1025, 125
        %v1028 = vpop.permute.xlu0 %1027
        %1029 = vrot.lane.b32.xlu0 %v1026, 125
        %v1030 = vpop.permute.xlu0 %1029
        %1031 = vrot.lane.b32.xlu0 %v1006, 125
        %v1032 = vpop.permute.xlu0 %1031
        %v1033 = vsel %vm920, %v1028, %v1030
        %v1034 = vsel %vm920, %v1030, %v1032
        %v1038 = vcombine.low %v1006, %v1006
        %v1039 = vcombine.low %v1013, %v1013
        %1040 = vrot.lane.b32.xlu0 %v1038, 122
        %v1041 = vpop.permute.xlu0 %1040
        %1042 = vrot.lane.b32.xlu0 %v1006, 122
        %v1043 = vpop.permute.xlu0 %1042
        %1044 = vrot.lane.b32.xlu0 %v1039, 122
        %v1045 = vpop.permute.xlu0 %1044
        %v1046 = vsel %vm934, %v1041, %v1043
        %v1047 = vsel %vm934, %v1043, %v1045
        %v1052 = vcombine.low %v997, %v997
        %v1054 = vunpack.c.l.s4 1983009808
        %v1055 = vunpack.c.0.s8 %v1054
        %v1056 = vlaneseq
        %v1057 = vshrl.u32 %v1056, 7
        %v1058 = vsub.s32 %v1055, %v1057
        %v1059 = vrot.slane %v1052, %v1058
        %v1061 = vunpack.c.l.s4 1983009808
        %v1062 = vunpack.c.0.s8 %v1061
        %v1063 = vlaneseq
        %v1064 = vshrl.u32 %v1063, 7
        %v1065 = vsub.s32 %v1062, %v1064
        %v1066 = vrot.slane %v997, %v1065
        %v1067 = vcombine.low %v1059, %v1059
        %v1068 = vcombine.low %v1066, %v1066
        %1069 = vrot.lane.b32.xlu0 %v1067, 92
        %v1070 = vpop.permute.xlu0 %1069
        %1071 = vrot.lane.b32.xlu0 %v1059, 92
        %v1072 = vpop.permute.xlu0 %1071
        %1073 = vrot.lane.b32.xlu0 %v1068, 92
        %v1074 = vpop.permute.xlu0 %1073
        %vm1075 = vcmask 752640
        %v1076 = vsel %vm1075, %v1070, %v1072
        %v1077 = vsel %vm1075, %v1072, %v1074
        %v1081 = vsel %vm598, %v1006, %v1033
        %v1082 = vsel %vm598, %v1014, %v1034
        %v1083 = vsel %vm598, %v1013, %v1032
        %v1084 = vsel %vm956, %v1081, %v1046
        %v1085 = vsel %vm956, %v1082, %v1047
        %v1086 = vsel %vm956, %v1083, %v1045
        %v1087 = vsel %vm960, %v1084, %v1070
        %v1088 = vsel %vm960, %v1085, %v1076
        %v1089 = vsel %vm960, %v1086, %v1077
        %v1090 = vld [vmem:[#allocation4 + $0x10] sm:$0xff]
        %v1091 = vld [vmem:[#allocation4 + $0x18] sm:$0xff]
        %1094 = vrot.lane.b32.xlu0 %v1090, 115
        %v1095 = vpop.permute.xlu0 %1094
        %1096 = vrot.lane.b32.xlu0 %v1091, 115
        %v1097 = vpop.permute.xlu0 %1096
        %vm1098 = vcmask 941056
        %v1099 = vsel %vm1098, %v1095, %v1097
        %v1103 = vmul.f32 %v1087, %v1095
        %v1104 = vmul.f32 %v1088, %v1099
        %v1105 = vmul.f32 %v1089, %v1097
        %1109 = vrot.lane.b32.xlu0 %v1103, 13
        %v1110 = vpop.permute.xlu0 %1109
        %1111 = vrot.lane.b32.xlu0 %v1104, 13
        %v1112 = vpop.permute.xlu0 %1111
        %1113 = vrot.lane.b32.xlu0 %v1105, 13
        %v1114 = vpop.permute.xlu0 %1113
        %vm1115 = vcmask 105472
        %v1116 = vsel %vm1115, %v1110, %v1112
        %v1117 = vsel %vm1115, %v1112, %v1114
        %1120 = vst [vmem:[#allocation3 + $0x10] sm:$0xff] %v1116
        %1121 = vst [vmem:[#allocation3 + $0x18] sm:$0xff] %v1117
        %v1122 = vld [vmem:[#allocation2 + $0x2] sm:$0x3f]
        %v1124 = vcombine.high %v1122, %v1122
        %v1126 = vunpack.c.l.s4 1983009808
        %v1127 = vunpack.c.0.s8 %v1126
        %v1128 = vlaneseq
        %v1129 = vshrl.u32 %v1128, 7
        %v1130 = vsub.s32 %v1127, %v1129
        %v1131 = vrot.slane %v1122, %v1130
        %v1133 = vunpack.c.l.s4 1983009808
        %v1134 = vunpack.c.0.s8 %v1133
        %v1135 = vlaneseq
        %v1136 = vshrl.u32 %v1135, 7
        %v1137 = vsub.s32 %v1134, %v1136
        %v1138 = vrot.slane %v1124, %v1137
        %v1139 = vcombine.high %v1131, %v1131
        %v1143 = vcombine.low %v1122, %v1122
        %v1145 = vunpack.c.l.s4 1983009808
        %v1146 = vunpack.c.0.s8 %v1145
        %v1147 = vlaneseq
        %v1148 = vshrl.u32 %v1147, 7
        %v1149 = vsub.s32 %v1146, %v1148
        %v1150 = vrot.slane %v1143, %v1149
        %v1151 = vcombine.high %v1150, %v1150
        %1152 = vrot.lane.b32.xlu0 %v1150, 125
        %v1153 = vpop.permute.xlu0 %1152
        %1154 = vrot.lane.b32.xlu0 %v1151, 125
        %v1155 = vpop.permute.xlu0 %1154
        %1156 = vrot.lane.b32.xlu0 %v1131, 125
        %v1157 = vpop.permute.xlu0 %1156
        %v1158 = vsel %vm920, %v1153, %v1155
        %v1159 = vsel %vm920, %v1155, %v1157
        %v1163 = vcombine.low %v1131, %v1131
        %v1164 = vcombine.low %v1138, %v1138
        %1165 = vrot.lane.b32.xlu0 %v1163, 122
        %v1166 = vpop.permute.xlu0 %1165
        %1167 = vrot.lane.b32.xlu0 %v1131, 122
        %v1168 = vpop.permute.xlu0 %1167
        %1169 = vrot.lane.b32.xlu0 %v1164, 122
        %v1170 = vpop.permute.xlu0 %1169
        %v1171 = vsel %vm934, %v1166, %v1168
        %v1172 = vsel %vm934, %v1168, %v1170
        %v1176 = vcombine.low %v1150, %v1150
        %1177 = vrot.lane.b32.xlu0 %v1176, 119
        %v1178 = vpop.permute.xlu0 %1177
        %1179 = vrot.lane.b32.xlu0 %v1150, 119
        %v1180 = vpop.permute.xlu0 %1179
        %1181 = vrot.lane.b32.xlu0 %v1163, 119
        %v1182 = vpop.permute.xlu0 %1181
        %v1183 = vsel %vm947, %v1178, %v1180
        %v1184 = vsel %vm947, %v1180, %v1182
        %v1188 = vsel %vm598, %v1131, %v1158
        %v1189 = vsel %vm598, %v1139, %v1159
        %v1190 = vsel %vm598, %v1138, %v1157
        %v1191 = vsel %vm956, %v1188, %v1171
        %v1192 = vsel %vm956, %v1189, %v1172
        %v1193 = vsel %vm956, %v1190, %v1170
        %v1194 = vsel %vm960, %v1191, %v1183
        %v1195 = vsel %vm960, %v1192, %v1184
        %v1196 = vsel %vm960, %v1193, %v1182
        %v1197 = vld [vmem:[#allocation4 + $0x20] sm:$0xff]
        %v1198 = vld [vmem:[#allocation4 + $0x28] sm:$0xff]
        %1201 = vrot.lane.b32.xlu0 %v1197, 26
        %v1202 = vpop.permute.xlu0 %1201
        %1203 = vrot.lane.b32.xlu0 %v1198, 26
        %v1204 = vpop.permute.xlu0 %1203
        %vm1205 = vcmask 211968
        %v1206 = vsel %vm1205, %v1202, %v1204
        %v1210 = vmul.f32 %v1194, %v1202
        %v1211 = vmul.f32 %v1195, %v1206
        %v1212 = vmul.f32 %v1196, %v1204
        %1216 = vrot.lane.b32.xlu0 %v1210, 102
        %v1217 = vpop.permute.xlu0 %1216
        %1218 = vrot.lane.b32.xlu0 %v1211, 102
        %v1219 = vpop.permute.xlu0 %1218
        %1220 = vrot.lane.b32.xlu0 %v1212, 102
        %v1221 = vpop.permute.xlu0 %1220
        %vm1222 = vcmask 834560
        %v1223 = vsel %vm1222, %v1217, %v1219
        %v1224 = vsel %vm1222, %v1219, %v1221
        %1227 = vst [vmem:[#allocation3 + $0x20] sm:$0xff] %v1223
        %1228 = vst [vmem:[#allocation3 + $0x28] sm:$0xff] %v1224
        %v1229 = vld [vmem:[#allocation2 + $0x2] sm:$0x3f]
        %v1231 = vcombine.high %v1229, %v1229
        %v1233 = vunpack.c.l.s4 1983009808
        %v1234 = vunpack.c.0.s8 %v1233
        %v1235 = vlaneseq
        %v1236 = vshrl.u32 %v1235, 7
        %v1237 = vsub.s32 %v1234, %v1236
        %v1238 = vrot.slane %v1229, %v1237
        %v1240 = vunpack.c.l.s4 1983009808
        %v1241 = vunpack.c.0.s8 %v1240
        %v1242 = vlaneseq
        %v1243 = vshrl.u32 %v1242, 7
        %v1244 = vsub.s32 %v1241, %v1243
        %v1245 = vrot.slane %v1231, %v1244
        %v1246 = vcombine.high %v1238, %v1238
        %v1250 = vcombine.low %v1229, %v1229
        %v1252 = vunpack.c.l.s4 1983009808
        %v1253 = vunpack.c.0.s8 %v1252
        %v1254 = vlaneseq
        %v1255 = vshrl.u32 %v1254, 7
        %v1256 = vsub.s32 %v1253, %v1255
        %v1257 = vrot.slane %v1250, %v1256
        %v1258 = vcombine.high %v1257, %v1257
        %1259 = vrot.lane.b32.xlu0 %v1257, 125
        %v1260 = vpop.permute.xlu0 %1259
        %1261 = vrot.lane.b32.xlu0 %v1258, 125
        %v1262 = vpop.permute.xlu0 %1261
        %1263 = vrot.lane.b32.xlu0 %v1238, 125
        %v1264 = vpop.permute.xlu0 %1263
        %v1265 = vsel %vm920, %v1260, %v1262
        %v1266 = vsel %vm920, %v1262, %v1264
        %v1270 = vcombine.low %v1238, %v1238
        %v1271 = vcombine.low %v1245, %v1245
        %1272 = vrot.lane.b32.xlu0 %v1270, 95
        %v1273 = vpop.permute.xlu0 %1272
        %1274 = vrot.lane.b32.xlu0 %v1238, 95
        %v1275 = vpop.permute.xlu0 %1274
        %1276 = vrot.lane.b32.xlu0 %v1271, 95
        %v1277 = vpop.permute.xlu0 %1276
        %vm1278 = vcmask 777216
        %v1279 = vsel %vm1278, %v1273, %v1275
        %v1280 = vsel %vm1278, %v1275, %v1277
        %v1284 = vcombine.low %v1257, %v1257
        %1285 = vrot.lane.b32.xlu0 %v1284, 92
        %v1286 = vpop.permute.xlu0 %1285
        %1287 = vrot.lane.b32.xlu0 %v1257, 92
        %v1288 = vpop.permute.xlu0 %1287
        %1289 = vrot.lane.b32.xlu0 %v1270, 92
        %v1290 = vpop.permute.xlu0 %1289
        %v1291 = vsel %vm1075, %v1286, %v1288
        %v1292 = vsel %vm1075, %v1288, %v1290
        %v1296 = vsel %vm598, %v1238, %v1265
        %v1297 = vsel %vm598, %v1246, %v1266
        %v1298 = vsel %vm598, %v1245, %v1264
        %v1299 = vsel %vm956, %v1296, %v1279
        %v1300 = vsel %vm956, %v1297, %v1280
        %v1301 = vsel %vm956, %v1298, %v1277
        %v1302 = vsel %vm960, %v1299, %v1291
        %v1303 = vsel %vm960, %v1300, %v1292
        %v1304 = vsel %vm960, %v1301, %v1290
        %v1305 = vld [vmem:[#allocation4 + $0x30] sm:$0xff]
        %v1306 = vld [vmem:[#allocation4 + $0x38] sm:$0xff]
        %1309 = vrot.lane.b32.xlu0 %v1305, 38
        %v1310 = vpop.permute.xlu0 %1309
        %1311 = vrot.lane.b32.xlu0 %v1306, 38
        %v1312 = vpop.permute.xlu0 %1311
        %vm1313 = vcmask 310272
        %v1314 = vsel %vm1313, %v1310, %v1312
        %v1318 = vmul.f32 %v1302, %v1310
        %v1319 = vmul.f32 %v1303, %v1314
        %v1320 = vmul.f32 %v1304, %v1312
        %1324 = vrot.lane.b32.xlu0 %v1318, 90
        %v1325 = vpop.permute.xlu0 %1324
        %1326 = vrot.lane.b32.xlu0 %v1319, 90
        %v1327 = vpop.permute.xlu0 %1326
        %1328 = vrot.lane.b32.xlu0 %v1320, 90
        %v1329 = vpop.permute.xlu0 %1328
        %vm1330 = vcmask 736256
        %v1331 = vsel %vm1330, %v1325, %v1327
        %v1332 = vsel %vm1330, %v1327, %v1329
        %1335 = vst [vmem:[#allocation3 + $0x30] sm:$0xff] %v1331
        %1336 = vst [vmem:[#allocation3 + $0x38] sm:$0xff] %v1332
        %v1337 = vld [vmem:[#allocation2 + $0x2] sm:$0x3f]
        %v1339 = vcombine.high %v1337, %v1337
        %v1341 = vunpack.c.l.s4 1983009808
        %v1342 = vunpack.c.0.s8 %v1341
        %v1343 = vlaneseq
        %v1344 = vshrl.u32 %v1343, 7
        %v1345 = vsub.s32 %v1342, %v1344
        %v1346 = vrot.slane %v1337, %v1345
        %v1348 = vunpack.c.l.s4 1983009808
        %v1349 = vunpack.c.0.s8 %v1348
        %v1350 = vlaneseq
        %v1351 = vshrl.u32 %v1350, 7
        %v1352 = vsub.s32 %v1349, %v1351
        %v1353 = vrot.slane %v1339, %v1352
        %v1354 = vcombine.high %v1346, %v1346
        %v1358 = vcombine.low %v1337, %v1337
        %v1360 = vunpack.c.l.s4 1983009808
        %v1361 = vunpack.c.0.s8 %v1360
        %v1362 = vlaneseq
        %v1363 = vshrl.u32 %v1362, 7
        %v1364 = vsub.s32 %v1361, %v1363
        %v1365 = vrot.slane %v1358, %v1364
        %v1366 = vcombine.high %v1365, %v1365
        %1367 = vrot.lane.b32.xlu0 %v1365, 125
        %v1368 = vpop.permute.xlu0 %1367
        %1369 = vrot.lane.b32.xlu0 %v1366, 125
        %v1370 = vpop.permute.xlu0 %1369
        %1371 = vrot.lane.b32.xlu0 %v1346, 125
        %v1372 = vpop.permute.xlu0 %1371
        %v1373 = vsel %vm920, %v1368, %v1370
        %v1374 = vsel %vm920, %v1370, %v1372
        %v1378 = vcombine.low %v1346, %v1346
        %v1379 = vcombine.low %v1353, %v1353
        %1380 = vrot.lane.b32.xlu0 %v1378, 122
        %v1381 = vpop.permute.xlu0 %1380
        %1382 = vrot.lane.b32.xlu0 %v1346, 122
        %v1383 = vpop.permute.xlu0 %1382
        %1384 = vrot.lane.b32.xlu0 %v1379, 122
        %v1385 = vpop.permute.xlu0 %1384
        %v1386 = vsel %vm934, %v1381, %v1383
        %v1387 = vsel %vm934, %v1383, %v1385
        %v1391 = vcombine.low %v1365, %v1365
        %1392 = vrot.lane.b32.xlu0 %v1391, 119
        %v1393 = vpop.permute.xlu0 %1392
        %1394 = vrot.lane.b32.xlu0 %v1365, 119
        %v1395 = vpop.permute.xlu0 %1394
        %1396 = vrot.lane.b32.xlu0 %v1378, 119
        %v1397 = vpop.permute.xlu0 %1396
        %v1398 = vsel %vm947, %v1393, %v1395
        %v1399 = vsel %vm947, %v1395, %v1397
        %v1403 = vsel %vm598, %v1346, %v1373
        %v1404 = vsel %vm598, %v1354, %v1374
        %v1405 = vsel %vm598, %v1353, %v1372
        %v1406 = vsel %vm956, %v1403, %v1386
        %v1407 = vsel %vm956, %v1404, %v1387
        %v1408 = vsel %vm956, %v1405, %v1385
        %v1409 = vsel %vm960, %v1406, %v1398
        %v1410 = vsel %vm960, %v1407, %v1399
        %v1411 = vsel %vm960, %v1408, %v1397
        %v1412 = vld [vmem:[#allocation4 + $0x40] sm:$0xff]
        %v1413 = vld [vmem:[#allocation4 + $0x48] sm:$0xff]
        %1416 = vrot.lane.b32.xlu0 %v1412, 77
        %v1417 = vpop.permute.xlu0 %1416
        %1418 = vrot.lane.b32.xlu0 %v1413, 77
        %v1419 = vpop.permute.xlu0 %1418
        %vm1420 = vcmask 629760
        %v1421 = vsel %vm1420, %v1417, %v1419
        %v1425 = vmul.f32 %v1409, %v1417
        %v1426 = vmul.f32 %v1410, %v1421
        %v1427 = vmul.f32 %v1411, %v1419
        %1431 = vrot.lane.b32.xlu0 %v1425, 51
        %v1432 = vpop.permute.xlu0 %1431
        %1433 = vrot.lane.b32.xlu0 %v1426, 51
        %v1434 = vpop.permute.xlu0 %1433
        %1435 = vrot.lane.b32.xlu0 %v1427, 51
        %v1436 = vpop.permute.xlu0 %1435
        %vm1437 = vcmask 416768
        %v1438 = vsel %vm1437, %v1432, %v1434
        %v1439 = vsel %vm1437, %v1434, %v1436
        %1442 = vst [vmem:[#allocation3 + $0x40] sm:$0xff] %v1438
        %1443 = vst [vmem:[#allocation3 + $0x48] sm:$0xff] %v1439
        %v1444 = vld [vmem:[#allocation2 + $0x2] sm:$0x3f]
        %v1446 = vcombine.high %v1444, %v1444
        %v1448 = vunpack.c.l.s4 1983009808
        %v1449 = vunpack.c.0.s8 %v1448
        %v1450 = vlaneseq
        %v1451 = vshrl.u32 %v1450, 7
        %v1452 = vsub.s32 %v1449, %v1451
        %v1453 = vrot.slane %v1444, %v1452
        %v1455 = vunpack.c.l.s4 1983009808
        %v1456 = vunpack.c.0.s8 %v1455
        %v1457 = vlaneseq
        %v1458 = vshrl.u32 %v1457, 7
        %v1459 = vsub.s32 %v1456, %v1458
        %v1460 = vrot.slane %v1446, %v1459
        %v1461 = vcombine.high %v1453, %v1453
        %v1465 = vcombine.low %v1444, %v1444
        %v1467 = vunpack.c.l.s4 1983009808
        %v1468 = vunpack.c.0.s8 %v1467
        %v1469 = vlaneseq
        %v1470 = vshrl.u32 %v1469, 7
        %v1471 = vsub.s32 %v1468, %v1470
        %v1472 = vrot.slane %v1465, %v1471
        %v1473 = vcombine.high %v1472, %v1472
        %1474 = vrot.lane.b32.xlu0 %v1472, 98
        %v1475 = vpop.permute.xlu0 %1474
        %1476 = vrot.lane.b32.xlu0 %v1473, 98
        %v1477 = vpop.permute.xlu0 %1476
        %1478 = vrot.lane.b32.xlu0 %v1453, 98
        %v1479 = vpop.permute.xlu0 %1478
        %vm1480 = vcmask 801792
        %v1481 = vsel %vm1480, %v1475, %v1477
        %v1482 = vsel %vm1480, %v1477, %v1479
        %v1486 = vcombine.low %v1453, %v1453
        %v1487 = vcombine.low %v1460, %v1460
        %1488 = vrot.lane.b32.xlu0 %v1486, 95
        %v1489 = vpop.permute.xlu0 %1488
        %1490 = vrot.lane.b32.xlu0 %v1453, 95
        %v1491 = vpop.permute.xlu0 %1490
        %1492 = vrot.lane.b32.xlu0 %v1487, 95
        %v1493 = vpop.permute.xlu0 %1492
        %v1494 = vsel %vm1278, %v1489, %v1491
        %v1495 = vsel %vm1278, %v1491, %v1493
        %v1499 = vcombine.low %v1472, %v1472
        %1500 = vrot.lane.b32.xlu0 %v1499, 92
        %v1501 = vpop.permute.xlu0 %1500
        %1502 = vrot.lane.b32.xlu0 %v1472, 92
        %v1503 = vpop.permute.xlu0 %1502
        %1504 = vrot.lane.b32.xlu0 %v1486, 92
        %v1505 = vpop.permute.xlu0 %1504
        %v1506 = vsel %vm1075, %v1501, %v1503
        %v1507 = vsel %vm1075, %v1503, %v1505
        %v1511 = vsel %vm598, %v1453, %v1481
        %v1512 = vsel %vm598, %v1461, %v1482
        %v1513 = vsel %vm598, %v1460, %v1479
        %v1514 = vsel %vm956, %v1511, %v1494
        %v1515 = vsel %vm956, %v1512, %v1495
        %v1516 = vsel %vm956, %v1513, %v1493
        %v1517 = vsel %vm960, %v1514, %v1506
        %v1518 = vsel %vm960, %v1515, %v1507
        %v1519 = vsel %vm960, %v1516, %v1505
        %v1520 = vld [vmem:[#allocation4 + $0x50] sm:$0xff]
        %v1521 = vld [vmem:[#allocation4 + $0x58] sm:$0xff]
        %1524 = vrot.lane.b32.xlu0 %v1520, 89
        %v1525 = vpop.permute.xlu0 %1524
        %1526 = vrot.lane.b32.xlu0 %v1521, 89
        %v1527 = vpop.permute.xlu0 %1526
        %vm1528 = vcmask 728064
        %v1529 = vsel %vm1528, %v1525, %v1527
        %v1533 = vmul.f32 %v1517, %v1525
        %v1534 = vmul.f32 %v1518, %v1529
        %v1535 = vmul.f32 %v1519, %v1527
        %1539 = vrot.lane.b32.xlu0 %v1533, 39
        %v1540 = vpop.permute.xlu0 %1539
        %1541 = vrot.lane.b32.xlu0 %v1534, 39
        %v1542 = vpop.permute.xlu0 %1541
        %1543 = vrot.lane.b32.xlu0 %v1535, 39
        %v1544 = vpop.permute.xlu0 %1543
        %vm1545 = vcmask 318464
        %v1546 = vsel %vm1545, %v1540, %v1542
        %v1547 = vsel %vm1545, %v1542, %v1544
        %1550 = vst [vmem:[#allocation3 + $0x50] sm:$0xff] %v1546
        %1551 = vst [vmem:[#allocation3 + $0x58] sm:$0xff] %v1547
        %v1552 = vld [vmem:[#allocation2 + $0x4] sm:$0xf]
        %v1553 = vld [vmem:[#allocation2 + $0x4] sm:$0x3f]
        %v1556 = vunpack.c.l.s4 1983009808
        %v1557 = vunpack.c.0.s8 %v1556
        %v1558 = vlaneseq
        %v1559 = vshrl.u32 %v1558, 7
        %v1560 = vsub.s32 %v1557, %v1559
        %v1561 = vrot.slane %v1552, %v1560
        %v1562 = vcombine.high %v1561, %v1561
        %v1566 = vcombine.low %v1553, %v1553
        %v1568 = vunpack.c.l.s4 1983009808
        %v1569 = vunpack.c.0.s8 %v1568
        %v1570 = vlaneseq
        %v1571 = vshrl.u32 %v1570, 7
        %v1572 = vsub.s32 %v1569, %v1571
        %v1573 = vrot.slane %v1566, %v1572
        %v1575 = vunpack.c.l.s4 1983009808
        %v1576 = vunpack.c.0.s8 %v1575
        %v1577 = vlaneseq
        %v1578 = vshrl.u32 %v1577, 7
        %v1579 = vsub.s32 %v1576, %v1578
        %v1580 = vrot.slane %v1553, %v1579
        %v1581 = vcombine.high %v1573, %v1573
        %1582 = vrot.lane.b32.xlu0 %v1573, 125
        %v1583 = vpop.permute.xlu0 %1582
        %1584 = vrot.lane.b32.xlu0 %v1581, 125
        %v1585 = vpop.permute.xlu0 %1584
        %1586 = vrot.lane.b32.xlu0 %v1580, 125
        %v1587 = vpop.permute.xlu0 %1586
        %v1588 = vsel %vm920, %v1583, %v1585
        %v1589 = vsel %vm920, %v1585, %v1587
        %v1592 = vcombine.high %v1553, %v1553
        %v1594 = vunpack.c.l.s4 1983009808
        %v1595 = vunpack.c.0.s8 %v1594
        %v1596 = vlaneseq
        %v1597 = vshrl.u32 %v1596, 7
        %v1598 = vsub.s32 %v1595, %v1597
        %v1599 = vrot.slane %v1592, %v1598
        %v1600 = vcombine.low %v1580, %v1580
        %v1601 = vcombine.low %v1599, %v1599
        %1602 = vrot.lane.b32.xlu0 %v1600, 122
        %v1603 = vpop.permute.xlu0 %1602
        %1604 = vrot.lane.b32.xlu0 %v1580, 122
        %v1605 = vpop.permute.xlu0 %1604
        %1606 = vrot.lane.b32.xlu0 %v1601, 122
        %v1607 = vpop.permute.xlu0 %1606
        %v1608 = vsel %vm934, %v1603, %v1605
        %v1609 = vsel %vm934, %v1605, %v1607
        %v1612 = vcombine.low %v1573, %v1573
        %1613 = vrot.lane.b32.xlu0 %v1612, 119
        %v1614 = vpop.permute.xlu0 %1613
        %1615 = vrot.lane.b32.xlu0 %v1573, 119
        %v1616 = vpop.permute.xlu0 %1615
        %1617 = vrot.lane.b32.xlu0 %v1600, 119
        %v1618 = vpop.permute.xlu0 %1617
        %v1619 = vsel %vm947, %v1614, %v1616
        %v1620 = vsel %vm947, %v1616, %v1618
        %v1623 = vsel %vm598, %v1561, %v1588
        %v1624 = vsel %vm598, %v1562, %v1589
        %v1625 = vsel %vm956, %v1623, %v1608
        %v1626 = vsel %vm956, %v1624, %v1609
        %v1627 = vsel %vm960, %v1625, %v1619
        %v1628 = vsel %vm960, %v1626, %v1620
        %v1629 = vld [vmem:[#allocation4 + $0x60] sm:$0xff]
        %v1630 = vld [vmem:[#allocation4 + $0x68] sm:$0xff]
        %v1631 = vmul.f32 %v1627, %v1629
        %v1632 = vmul.f32 %v1628, %v1630
        %1633 = vst [vmem:[#allocation3 + $0x60] sm:$0xff] %v1631
        %1634 = vst [vmem:[#allocation3 + $0x68] sm:$0xff] %v1632
        %v1635 = vld [vmem:[#allocation2 + $0x4] sm:$0x3f]
        %v1637 = vcombine.high %v1635, %v1635
        %v1639 = vunpack.c.l.s4 1983009808
        %v1640 = vunpack.c.0.s8 %v1639
        %v1641 = vlaneseq
        %v1642 = vshrl.u32 %v1641, 7
        %v1643 = vsub.s32 %v1640, %v1642
        %v1644 = vrot.slane %v1635, %v1643
        %v1646 = vunpack.c.l.s4 1983009808
        %v1647 = vunpack.c.0.s8 %v1646
        %v1648 = vlaneseq
        %v1649 = vshrl.u32 %v1648, 7
        %v1650 = vsub.s32 %v1647, %v1649
        %v1651 = vrot.slane %v1637, %v1650
        %v1652 = vcombine.high %v1644, %v1644
        %v1656 = vcombine.low %v1635, %v1635
        %v1658 = vunpack.c.l.s4 1983009808
        %v1659 = vunpack.c.0.s8 %v1658
        %v1660 = vlaneseq
        %v1661 = vshrl.u32 %v1660, 7
        %v1662 = vsub.s32 %v1659, %v1661
        %v1663 = vrot.slane %v1656, %v1662
        %v1664 = vcombine.high %v1663, %v1663
        %1665 = vrot.lane.b32.xlu0 %v1663, 125
        %v1666 = vpop.permute.xlu0 %1665
        %1667 = vrot.lane.b32.xlu0 %v1664, 125
        %v1668 = vpop.permute.xlu0 %1667
        %1669 = vrot.lane.b32.xlu0 %v1644, 125
        %v1670 = vpop.permute.xlu0 %1669
        %v1671 = vsel %vm920, %v1666, %v1668
        %v1672 = vsel %vm920, %v1668, %v1670
        %v1676 = vcombine.low %v1644, %v1644
        %v1677 = vcombine.low %v1651, %v1651
        %1678 = vrot.lane.b32.xlu0 %v1676, 122
        %v1679 = vpop.permute.xlu0 %1678
        %1680 = vrot.lane.b32.xlu0 %v1644, 122
        %v1681 = vpop.permute.xlu0 %1680
        %1682 = vrot.lane.b32.xlu0 %v1677, 122
        %v1683 = vpop.permute.xlu0 %1682
        %v1684 = vsel %vm934, %v1679, %v1681
        %v1685 = vsel %vm934, %v1681, %v1683
        %v1689 = vcombine.low %v1663, %v1663
        %1690 = vrot.lane.b32.xlu0 %v1689, 119
        %v1691 = vpop.permute.xlu0 %1690
        %1692 = vrot.lane.b32.xlu0 %v1663, 119
        %v1693 = vpop.permute.xlu0 %1692
        %1694 = vrot.lane.b32.xlu0 %v1676, 119
        %v1695 = vpop.permute.xlu0 %1694
        %v1696 = vsel %vm947, %v1691, %v1693
        %v1697 = vsel %vm947, %v1693, %v1695
        %v1701 = vsel %vm598, %v1644, %v1671
        %v1702 = vsel %vm598, %v1652, %v1672
        %v1703 = vsel %vm598, %v1651, %v1670
        %v1704 = vsel %vm956, %v1701, %v1684
        %v1705 = vsel %vm956, %v1702, %v1685
        %v1706 = vsel %vm956, %v1703, %v1683
        %v1707 = vsel %vm960, %v1704, %v1696
        %v1708 = vsel %vm960, %v1705, %v1697
        %v1709 = vsel %vm960, %v1706, %v1695
        %v1710 = vld [vmem:[#allocation4 + $0x70] sm:$0xff]
        %v1711 = vld [vmem:[#allocation4 + $0x78] sm:$0xff]
        %1714 = vrot.lane.b32.xlu0 %v1710, 39
        %v1715 = vpop.permute.xlu0 %1714
        %1716 = vrot.lane.b32.xlu0 %v1711, 39
        %v1717 = vpop.permute.xlu0 %1716
        %v1718 = vsel %vm1545, %v1715, %v1717
        %v1722 = vmul.f32 %v1707, %v1715
        %v1723 = vmul.f32 %v1708, %v1718
        %v1724 = vmul.f32 %v1709, %v1717
        %1728 = vrot.lane.b32.xlu0 %v1722, 89
        %v1729 = vpop.permute.xlu0 %1728
        %1730 = vrot.lane.b32.xlu0 %v1723, 89
        %v1731 = vpop.permute.xlu0 %1730
        %1732 = vrot.lane.b32.xlu0 %v1724, 89
        %v1733 = vpop.permute.xlu0 %1732
        %v1734 = vsel %vm1528, %v1729, %v1731
        %v1735 = vsel %vm1528, %v1731, %v1733
        %1738 = vst [vmem:[#allocation3 + $0x70] sm:$0xff] %v1734
        %1739 = vst [vmem:[#allocation3 + $0x78] sm:$0xff] %v1735
        %v1740 = vld [vmem:[#allocation2 + $0x4] sm:$0x3f]
        %v1742 = vcombine.high %v1740, %v1740
        %v1744 = vunpack.c.l.s4 1983009808
        %v1745 = vunpack.c.0.s8 %v1744
        %v1746 = vlaneseq
        %v1747 = vshrl.u32 %v1746, 7
        %v1748 = vsub.s32 %v1745, %v1747
        %v1749 = vrot.slane %v1740, %v1748
        %v1751 = vunpack.c.l.s4 1983009808
        %v1752 = vunpack.c.0.s8 %v1751
        %v1753 = vlaneseq
        %v1754 = vshrl.u32 %v1753, 7
        %v1755 = vsub.s32 %v1752, %v1754
        %v1756 = vrot.slane %v1742, %v1755
        %v1757 = vcombine.high %v1749, %v1749
        %v1761 = vcombine.low %v1740, %v1740
        %v1763 = vunpack.c.l.s4 1983009808
        %v1764 = vunpack.c.0.s8 %v1763
        %v1765 = vlaneseq
        %v1766 = vshrl.u32 %v1765, 7
        %v1767 = vsub.s32 %v1764, %v1766
        %v1768 = vrot.slane %v1761, %v1767
        %v1769 = vcombine.high %v1768, %v1768
        %1770 = vrot.lane.b32.xlu0 %v1768, 125
        %v1771 = vpop.permute.xlu0 %1770
        %1772 = vrot.lane.b32.xlu0 %v1769, 125
        %v1773 = vpop.permute.xlu0 %1772
        %1774 = vrot.lane.b32.xlu0 %v1749, 125
        %v1775 = vpop.permute.xlu0 %1774
        %v1776 = vsel %vm920, %v1771, %v1773
        %v1777 = vsel %vm920, %v1773, %v1775
        %v1781 = vcombine.low %v1749, %v1749
        %v1782 = vcombine.low %v1756, %v1756
        %1783 = vrot.lane.b32.xlu0 %v1781, 122
        %v1784 = vpop.permute.xlu0 %1783
        %1785 = vrot.lane.b32.xlu0 %v1749, 122
        %v1786 = vpop.permute.xlu0 %1785
        %1787 = vrot.lane.b32.xlu0 %v1782, 122
        %v1788 = vpop.permute.xlu0 %1787
        %v1789 = vsel %vm934, %v1784, %v1786
        %v1790 = vsel %vm934, %v1786, %v1788
        %v1794 = vcombine.low %v1768, %v1768
        %1795 = vrot.lane.b32.xlu0 %v1794, 92
        %v1796 = vpop.permute.xlu0 %1795
        %1797 = vrot.lane.b32.xlu0 %v1768, 92
        %v1798 = vpop.permute.xlu0 %1797
        %1799 = vrot.lane.b32.xlu0 %v1781, 92
        %v1800 = vpop.permute.xlu0 %1799
        %v1801 = vsel %vm1075, %v1796, %v1798
        %v1802 = vsel %vm1075, %v1798, %v1800
        %v1806 = vsel %vm598, %v1749, %v1776
        %v1807 = vsel %vm598, %v1757, %v1777
        %v1808 = vsel %vm598, %v1756, %v1775
        %v1809 = vsel %vm956, %v1806, %v1789
        %v1810 = vsel %vm956, %v1807, %v1790
        %v1811 = vsel %vm956, %v1808, %v1788
        %v1812 = vsel %vm960, %v1809, %v1801
        %v1813 = vsel %vm960, %v1810, %v1802
        %v1814 = vsel %vm960, %v1811, %v1800
        %v1815 = vld [vmem:[#allocation4 + $0x80] sm:$0xff]
        %v1816 = vld [vmem:[#allocation4 + $0x88] sm:$0xff]
        %1819 = vrot.lane.b32.xlu0 %v1815, 51
        %v1820 = vpop.permute.xlu0 %1819
        %1821 = vrot.lane.b32.xlu0 %v1816, 51
        %v1822 = vpop.permute.xlu0 %1821
        %v1823 = vsel %vm1437, %v1820, %v1822
        %v1827 = vmul.f32 %v1812, %v1820
        %v1828 = vmul.f32 %v1813, %v1823
        %v1829 = vmul.f32 %v1814, %v1822
        %1833 = vrot.lane.b32.xlu0 %v1827, 77
        %v1834 = vpop.permute.xlu0 %1833
        %1835 = vrot.lane.b32.xlu0 %v1828, 77
        %v1836 = vpop.permute.xlu0 %1835
        %1837 = vrot.lane.b32.xlu0 %v1829, 77
        %v1838 = vpop.permute.xlu0 %1837
        %v1839 = vsel %vm1420, %v1834, %v1836
        %v1840 = vsel %vm1420, %v1836, %v1838
        %1843 = vst [vmem:[#allocation3 + $0x80] sm:$0xff] %v1839
        %1844 = vst [vmem:[#allocation3 + $0x88] sm:$0xff] %v1840
        %v1845 = vld [vmem:[#allocation2 + $0x4] sm:$0x3f]
        %v1847 = vcombine.high %v1845, %v1845
        %v1849 = vunpack.c.l.s4 1983009808
        %v1850 = vunpack.c.0.s8 %v1849
        %v1851 = vlaneseq
        %v1852 = vshrl.u32 %v1851, 7
        %v1853 = vsub.s32 %v1850, %v1852
        %v1854 = vrot.slane %v1845, %v1853
        %v1856 = vunpack.c.l.s4 1983009808
        %v1857 = vunpack.c.0.s8 %v1856
        %v1858 = vlaneseq
        %v1859 = vshrl.u32 %v1858, 7
        %v1860 = vsub.s32 %v1857, %v1859
        %v1861 = vrot.slane %v1847, %v1860
        %v1862 = vcombine.high %v1854, %v1854
        %v1866 = vcombine.low %v1845, %v1845
        %v1868 = vunpack.c.l.s4 1983009808
        %v1869 = vunpack.c.0.s8 %v1868
        %v1870 = vlaneseq
        %v1871 = vshrl.u32 %v1870, 7
        %v1872 = vsub.s32 %v1869, %v1871
        %v1873 = vrot.slane %v1866, %v1872
        %v1874 = vcombine.high %v1873, %v1873
        %1875 = vrot.lane.b32.xlu0 %v1873, 125
        %v1876 = vpop.permute.xlu0 %1875
        %1877 = vrot.lane.b32.xlu0 %v1874, 125
        %v1878 = vpop.permute.xlu0 %1877
        %1879 = vrot.lane.b32.xlu0 %v1854, 125
        %v1880 = vpop.permute.xlu0 %1879
        %v1881 = vsel %vm920, %v1876, %v1878
        %v1882 = vsel %vm920, %v1878, %v1880
        %v1886 = vcombine.low %v1854, %v1854
        %v1887 = vcombine.low %v1861, %v1861
        %1888 = vrot.lane.b32.xlu0 %v1886, 122
        %v1889 = vpop.permute.xlu0 %1888
        %1890 = vrot.lane.b32.xlu0 %v1854, 122
        %v1891 = vpop.permute.xlu0 %1890
        %1892 = vrot.lane.b32.xlu0 %v1887, 122
        %v1893 = vpop.permute.xlu0 %1892
        %v1894 = vsel %vm934, %v1889, %v1891
        %v1895 = vsel %vm934, %v1891, %v1893
        %v1899 = vcombine.low %v1873, %v1873
        %1900 = vrot.lane.b32.xlu0 %v1899, 119
        %v1901 = vpop.permute.xlu0 %1900
        %1902 = vrot.lane.b32.xlu0 %v1873, 119
        %v1903 = vpop.permute.xlu0 %1902
        %1904 = vrot.lane.b32.xlu0 %v1886, 119
        %v1905 = vpop.permute.xlu0 %1904
        %v1906 = vsel %vm947, %v1901, %v1903
        %v1907 = vsel %vm947, %v1903, %v1905
        %v1911 = vsel %vm598, %v1854, %v1881
        %v1912 = vsel %vm598, %v1862, %v1882
        %v1913 = vsel %vm598, %v1861, %v1880
        %v1914 = vsel %vm956, %v1911, %v1894
        %v1915 = vsel %vm956, %v1912, %v1895
        %v1916 = vsel %vm956, %v1913, %v1893
        %v1917 = vsel %vm960, %v1914, %v1906
        %v1918 = vsel %vm960, %v1915, %v1907
        %v1919 = vsel %vm960, %v1916, %v1905
        %v1920 = vld [vmem:[#allocation4 + $0x90] sm:$0xff]
        %v1921 = vld [vmem:[#allocation4 + $0x98] sm:$0xff]
        %1924 = vrot.lane.b32.xlu0 %v1920, 90
        %v1925 = vpop.permute.xlu0 %1924
        %1926 = vrot.lane.b32.xlu0 %v1921, 90
        %v1927 = vpop.permute.xlu0 %1926
        %v1928 = vsel %vm1330, %v1925, %v1927
        %v1932 = vmul.f32 %v1917, %v1925
        %v1933 = vmul.f32 %v1918, %v1928
        %v1934 = vmul.f32 %v1919, %v1927
        %1938 = vrot.lane.b32.xlu0 %v1932, 38
        %v1939 = vpop.permute.xlu0 %1938
        %1940 = vrot.lane.b32.xlu0 %v1933, 38
        %v1941 = vpop.permute.xlu0 %1940
        %1942 = vrot.lane.b32.xlu0 %v1934, 38
        %v1943 = vpop.permute.xlu0 %1942
        %v1944 = vsel %vm1313, %v1939, %v1941
        %v1945 = vsel %vm1313, %v1941, %v1943
        %1948 = vst [vmem:[#allocation3 + $0x90] sm:$0xff] %v1944
        %1949 = vst [vmem:[#allocation3 + $0x98] sm:$0xff] %v1945
        %v1950 = vld [vmem:[#allocation2 + $0x4] sm:$0x3f]
        %v1951 = vld [vmem:[#allocation2 + $0x6] sm:$0x3f]
        %v1953 = vcombine.high %v1950, %v1950
        %v1955 = vunpack.c.l.s4 1983009808
        %v1956 = vunpack.c.0.s8 %v1955
        %v1957 = vlaneseq
        %v1958 = vshrl.u32 %v1957, 7
        %v1959 = vsub.s32 %v1956, %v1958
        %v1960 = vrot.slane %v1950, %v1959
        %v1962 = vunpack.c.l.s4 1983009808
        %v1963 = vunpack.c.0.s8 %v1962
        %v1964 = vlaneseq
        %v1965 = vshrl.u32 %v1964, 7
        %v1966 = vsub.s32 %v1963, %v1965
        %v1967 = vrot.slane %v1953, %v1966
        %v1968 = vcombine.high %v1960, %v1960
        %v1972 = vcombine.low %v1950, %v1950
        %v1974 = vunpack.c.l.s4 1983009808
        %v1975 = vunpack.c.0.s8 %v1974
        %v1976 = vlaneseq
        %v1977 = vshrl.u32 %v1976, 7
        %v1978 = vsub.s32 %v1975, %v1977
        %v1979 = vrot.slane %v1972, %v1978
        %v1980 = vcombine.high %v1979, %v1979
        %1981 = vrot.lane.b32.xlu0 %v1979, 125
        %v1982 = vpop.permute.xlu0 %1981
        %1983 = vrot.lane.b32.xlu0 %v1980, 125
        %v1984 = vpop.permute.xlu0 %1983
        %1985 = vrot.lane.b32.xlu0 %v1960, 125
        %v1986 = vpop.permute.xlu0 %1985
        %v1987 = vsel %vm920, %v1982, %v1984
        %v1988 = vsel %vm920, %v1984, %v1986
        %v1993 = vcombine.high %v1951, %v1951
        %v1995 = vunpack.c.l.s4 1983009808
        %v1996 = vunpack.c.0.s8 %v1995
        %v1997 = vlaneseq
        %v1998 = vshrl.u32 %v1997, 7
        %v1999 = vsub.s32 %v1996, %v1998
        %v2000 = vrot.slane %v1951, %v1999
        %v2002 = vunpack.c.l.s4 1983009808
        %v2003 = vunpack.c.0.s8 %v2002
        %v2004 = vlaneseq
        %v2005 = vshrl.u32 %v2004, 7
        %v2006 = vsub.s32 %v2003, %v2005
        %v2007 = vrot.slane %v1993, %v2006
        %v2008 = vcombine.low %v2000, %v2000
        %v2009 = vcombine.low %v2007, %v2007
        %2010 = vrot.lane.b32.xlu0 %v2008, 95
        %v2011 = vpop.permute.xlu0 %2010
        %2012 = vrot.lane.b32.xlu0 %v2000, 95
        %v2013 = vpop.permute.xlu0 %2012
        %2014 = vrot.lane.b32.xlu0 %v2009, 95
        %v2015 = vpop.permute.xlu0 %2014
        %v2016 = vsel %vm1278, %v2011, %v2013
        %v2017 = vsel %vm1278, %v2013, %v2015
        %v2021 = vcombine.low %v1951, %v1951
        %v2023 = vunpack.c.l.s4 1983009808
        %v2024 = vunpack.c.0.s8 %v2023
        %v2025 = vlaneseq
        %v2026 = vshrl.u32 %v2025, 7
        %v2027 = vsub.s32 %v2024, %v2026
        %v2028 = vrot.slane %v2021, %v2027
        %v2029 = vcombine.low %v2028, %v2028
        %2030 = vrot.lane.b32.xlu0 %v2029, 92
        %v2031 = vpop.permute.xlu0 %2030
        %2032 = vrot.lane.b32.xlu0 %v2028, 92
        %v2033 = vpop.permute.xlu0 %2032
        %2034 = vrot.lane.b32.xlu0 %v2008, 92
        %v2035 = vpop.permute.xlu0 %2034
        %v2036 = vsel %vm1075, %v2031, %v2033
        %v2037 = vsel %vm1075, %v2033, %v2035
        %v2041 = vsel %vm598, %v1960, %v1987
        %v2042 = vsel %vm598, %v1968, %v1988
        %v2043 = vsel %vm598, %v1967, %v1986
        %v2044 = vsel %vm956, %v2041, %v2011
        %v2045 = vsel %vm956, %v2042, %v2016
        %v2046 = vsel %vm956, %v2043, %v2017
        %v2047 = vsel %vm960, %v2044, %v2031
        %v2048 = vsel %vm960, %v2045, %v2036
        %v2049 = vsel %vm960, %v2046, %v2037
        %v2050 = vld [vmem:[#allocation4 + $0xa0] sm:$0xff]
        %v2051 = vld [vmem:[#allocation4 + $0xa8] sm:$0xff]
        %2054 = vrot.lane.b32.xlu0 %v2050, 102
        %v2055 = vpop.permute.xlu0 %2054
        %2056 = vrot.lane.b32.xlu0 %v2051, 102
        %v2057 = vpop.permute.xlu0 %2056
        %v2058 = vsel %vm1222, %v2055, %v2057
        %v2062 = vmul.f32 %v2047, %v2055
        %v2063 = vmul.f32 %v2048, %v2058
        %v2064 = vmul.f32 %v2049, %v2057
        %2068 = vrot.lane.b32.xlu0 %v2062, 26
        %v2069 = vpop.permute.xlu0 %2068
        %2070 = vrot.lane.b32.xlu0 %v2063, 26
        %v2071 = vpop.permute.xlu0 %2070
        %2072 = vrot.lane.b32.xlu0 %v2064, 26
        %v2073 = vpop.permute.xlu0 %2072
        %v2074 = vsel %vm1205, %v2069, %v2071
        %v2075 = vsel %vm1205, %v2071, %v2073
        %2078 = vst [vmem:[#allocation3 + $0xa0] sm:$0xff] %v2074
        %2079 = vst [vmem:[#allocation3 + $0xa8] sm:$0xff] %v2075
        %v2080 = vld [vmem:[#allocation2 + $0x6] sm:$0x3f]
        %v2082 = vcombine.high %v2080, %v2080
        %v2084 = vunpack.c.l.s4 1983009808
        %v2085 = vunpack.c.0.s8 %v2084
        %v2086 = vlaneseq
        %v2087 = vshrl.u32 %v2086, 7
        %v2088 = vsub.s32 %v2085, %v2087
        %v2089 = vrot.slane %v2080, %v2088
        %v2091 = vunpack.c.l.s4 1983009808
        %v2092 = vunpack.c.0.s8 %v2091
        %v2093 = vlaneseq
        %v2094 = vshrl.u32 %v2093, 7
        %v2095 = vsub.s32 %v2092, %v2094
        %v2096 = vrot.slane %v2082, %v2095
        %v2097 = vcombine.high %v2089, %v2089
        %v2101 = vcombine.low %v2080, %v2080
        %v2103 = vunpack.c.l.s4 1983009808
        %v2104 = vunpack.c.0.s8 %v2103
        %v2105 = vlaneseq
        %v2106 = vshrl.u32 %v2105, 7
        %v2107 = vsub.s32 %v2104, %v2106
        %v2108 = vrot.slane %v2101, %v2107
        %v2109 = vcombine.high %v2108, %v2108
        %2110 = vrot.lane.b32.xlu0 %v2108, 125
        %v2111 = vpop.permute.xlu0 %2110
        %2112 = vrot.lane.b32.xlu0 %v2109, 125
        %v2113 = vpop.permute.xlu0 %2112
        %2114 = vrot.lane.b32.xlu0 %v2089, 125
        %v2115 = vpop.permute.xlu0 %2114
        %v2116 = vsel %vm920, %v2111, %v2113
        %v2117 = vsel %vm920, %v2113, %v2115
        %v2121 = vcombine.low %v2089, %v2089
        %v2122 = vcombine.low %v2096, %v2096
        %2123 = vrot.lane.b32.xlu0 %v2121, 122
        %v2124 = vpop.permute.xlu0 %2123
        %2125 = vrot.lane.b32.xlu0 %v2089, 122
        %v2126 = vpop.permute.xlu0 %2125
        %2127 = vrot.lane.b32.xlu0 %v2122, 122
        %v2128 = vpop.permute.xlu0 %2127
        %v2129 = vsel %vm934, %v2124, %v2126
        %v2130 = vsel %vm934, %v2126, %v2128
        %v2134 = vcombine.low %v2108, %v2108
        %2135 = vrot.lane.b32.xlu0 %v2134, 119
        %v2136 = vpop.permute.xlu0 %2135
        %2137 = vrot.lane.b32.xlu0 %v2108, 119
        %v2138 = vpop.permute.xlu0 %2137
        %2139 = vrot.lane.b32.xlu0 %v2121, 119
        %v2140 = vpop.permute.xlu0 %2139
        %v2141 = vsel %vm947, %v2136, %v2138
        %v2142 = vsel %vm947, %v2138, %v2140
        %v2146 = vsel %vm598, %v2089, %v2116
        %v2147 = vsel %vm598, %v2097, %v2117
        %v2148 = vsel %vm598, %v2096, %v2115
        %v2149 = vsel %vm956, %v2146, %v2129
        %v2150 = vsel %vm956, %v2147, %v2130
        %v2151 = vsel %vm956, %v2148, %v2128
        %v2152 = vsel %vm960, %v2149, %v2141
        %v2153 = vsel %vm960, %v2150, %v2142
        %v2154 = vsel %vm960, %v2151, %v2140
        %v2155 = vld [vmem:[#allocation4 + $0xb0] sm:$0xff]
        %v2156 = vld [vmem:[#allocation4 + $0xb8] sm:$0xff]
        %2159 = vrot.lane.b32.xlu0 %v2155, 13
        %v2160 = vpop.permute.xlu0 %2159
        %2161 = vrot.lane.b32.xlu0 %v2156, 13
        %v2162 = vpop.permute.xlu0 %2161
        %v2163 = vsel %vm1115, %v2160, %v2162
        %v2167 = vmul.f32 %v2152, %v2160
        %v2168 = vmul.f32 %v2153, %v2163
        %v2169 = vmul.f32 %v2154, %v2162
        %2173 = vrot.lane.b32.xlu0 %v2167, 115
        %v2174 = vpop.permute.xlu0 %2173
        %2175 = vrot.lane.b32.xlu0 %v2168, 115
        %v2176 = vpop.permute.xlu0 %2175
        %2177 = vrot.lane.b32.xlu0 %v2169, 115
        %v2178 = vpop.permute.xlu0 %2177
        %v2179 = vsel %vm1098, %v2174, %v2176
        %v2180 = vsel %vm1098, %v2176, %v2178
        %2183 = vst [vmem:[#allocation3 + $0xb0] sm:$0xff] %v2179
        %2184 = vst [vmem:[#allocation3 + $0xb8] sm:$0xff] %v2180
        %v2185 = vld [vmem:[#allocation2 + $0x6] sm:$0x3f]
        %v2187 = vcombine.high %v2185, %v2185
        %v2189 = vunpack.c.l.s4 1983009808
        %v2190 = vunpack.c.0.s8 %v2189
        %v2191 = vlaneseq
        %v2192 = vshrl.u32 %v2191, 7
        %v2193 = vsub.s32 %v2190, %v2192
        %v2194 = vrot.slane %v2185, %v2193
        %v2196 = vunpack.c.l.s4 1983009808
        %v2197 = vunpack.c.0.s8 %v2196
        %v2198 = vlaneseq
        %v2199 = vshrl.u32 %v2198, 7
        %v2200 = vsub.s32 %v2197, %v2199
        %v2201 = vrot.slane %v2187, %v2200
        %v2202 = vcombine.high %v2194, %v2194
        %v2206 = vcombine.low %v2185, %v2185
        %v2208 = vunpack.c.l.s4 1983009808
        %v2209 = vunpack.c.0.s8 %v2208
        %v2210 = vlaneseq
        %v2211 = vshrl.u32 %v2210, 7
        %v2212 = vsub.s32 %v2209, %v2211
        %v2213 = vrot.slane %v2206, %v2212
        %v2214 = vcombine.high %v2213, %v2213
        %v2217 = vcombine.low %v2194, %v2194
        %v2218 = vcombine.low %v2201, %v2201
        %v2221 = vcombine.low %v2213, %v2213
        %v2223 = vsel %vm598, %v2194, %v2213
        %v2224 = vsel %vm598, %v2202, %v2214
        %v2225 = vsel %vm598, %v2201, %v2194
        %v2226 = vsel %vm956, %v2223, %v2217
        %v2227 = vsel %vm956, %v2224, %v2194
        %v2228 = vsel %vm956, %v2225, %v2218
        %v2229 = vsel %vm960, %v2226, %v2221
        %v2230 = vsel %vm960, %v2227, %v2213
        %v2231 = vsel %vm960, %v2228, %v2217
        %v2232 = vld [vmem:[#allocation4 + $0xc0] sm:$0xff]
        %v2233 = vld [vmem:[#allocation4 + $0xc8] sm:$0xff]
        %2236 = vrot.lane.b32.xlu0 %v2232, 25
        %v2237 = vpop.permute.xlu0 %2236
        %2238 = vrot.lane.b32.xlu0 %v2233, 25
        %v2239 = vpop.permute.xlu0 %2238
        %v2240 = vsel %vm989, %v2237, %v2239
        %v2244 = vmul.f32 %v2229, %v2237
        %v2245 = vmul.f32 %v2230, %v2240
        %v2246 = vmul.f32 %v2231, %v2239
        %2250 = vrot.lane.b32.xlu0 %v2244, 103
        %v2251 = vpop.permute.xlu0 %2250
        %2252 = vrot.lane.b32.xlu0 %v2245, 103
        %v2253 = vpop.permute.xlu0 %2252
        %2254 = vrot.lane.b32.xlu0 %v2246, 103
        %v2255 = vpop.permute.xlu0 %2254
        %v2256 = vsel %vm972, %v2251, %v2253
        %v2257 = vsel %vm972, %v2253, %v2255
        %2260 = vst [vmem:[#allocation3 + $0xc0] sm:$0xff] %v2256
        %2261 = vst [vmem:[#allocation3 + $0xc8] sm:$0xff] %v2257
        %v2262 = vld [vmem:[#allocation7] sm:$0xff]
        %v2263 = vld [vmem:[#allocation7 + $0x8] sm:$0xff]
        %v2264 = vld [vmem:[#allocation7 + $0x10] sm:$0xff]
        %v2265 = vld [vmem:[#allocation7 + $0x18] sm:$0xff]
        %v2266 = vld [vmem:[#allocation3] sm:$0xff]
        %v2267 = vld [vmem:[#allocation3 + $0x8] sm:$0xff]
        %v2268 = vld [vmem:[#allocation3 + $0x10] sm:$0xff]
        %v2269 = vld [vmem:[#allocation3 + $0x18] sm:$0xff]
        %v2270 = vld [vmem:[#allocation3 + $0x20] sm:$0xff]
        %v2271 = vld [vmem:[#allocation3 + $0x28] sm:$0xff]
        %v2272 = vld [vmem:[#allocation3 + $0x30] sm:$0xff]
        %v2273 = vld [vmem:[#allocation3 + $0x38] sm:$0xff]
        %v2274 = vld [vmem:[#allocation3 + $0x40] sm:$0xff]
        %v2275 = vld [vmem:[#allocation3 + $0x48] sm:$0xff]
        %v2276 = vld [vmem:[#allocation3 + $0x50] sm:$0xff]
        %v2277 = vld [vmem:[#allocation3 + $0x58] sm:$0xff]
        %v2278 = vld [vmem:[#allocation3 + $0x60] sm:$0xff]
        %v2279 = vld [vmem:[#allocation3 + $0x68] sm:$0xff]
        %v2280 = vld [vmem:[#allocation3 + $0x70] sm:$0xff]
        %v2281 = vld [vmem:[#allocation3 + $0x78] sm:$0xff]
        %v2282 = vld [vmem:[#allocation3 + $0x80] sm:$0xff]
        %v2283 = vld [vmem:[#allocation3 + $0x88] sm:$0xff]
        %v2284 = vld [vmem:[#allocation3 + $0x90] sm:$0xff]
        %v2285 = vld [vmem:[#allocation3 + $0x98] sm:$0xff]
        %v2286 = vld [vmem:[#allocation3 + $0xa0] sm:$0xff]
        %v2287 = vld [vmem:[#allocation3 + $0xa8] sm:$0xff]
        %v2288 = vld [vmem:[#allocation3 + $0xb0] sm:$0xff]
        %v2289 = vld [vmem:[#allocation3 + $0xb8] sm:$0xff]
        %v2290 = vld [vmem:[#allocation3 + $0xc0] sm:$0xff]
        %v2291 = vld [vmem:[#allocation3 + $0xc8] sm:$0xff]
        %v2292 = vld [vmem:[%s7] sm:$0xff]
        %v2293 = vld [vmem:[%s7 + $0x8] sm:$0xff]
        %v2294 = vld [vmem:[%s7 + $0x10] sm:$0xff]
        %v2295 = vld [vmem:[%s7 + $0x18] sm:$0xff]
        %2297 = vset.pattern.permute.xlu0 0
        %2298 = vperm.xlu0 %2297, %v2292
        %v2299 = vpop.permute.xlu0 %2298
        %2302 = vset.pattern.permute.xlu0 0
        %2303 = vperm.xlu0 %2302, %v2293
        %v2304 = vpop.permute.xlu0 %2303
        %2307 = vset.pattern.permute.xlu0 0
        %2308 = vperm.xlu0 %2307, %v2294
        %v2309 = vpop.permute.xlu0 %2308
        %2312 = vset.pattern.permute.xlu0 0
        %2313 = vperm.xlu0 %2312, %v2295
        %v2314 = vpop.permute.xlu0 %2313
        %vm2316 = vcmask 850944
        %v2318 = vsel %vm2316, %v2262, 0
        %v2321 = vsel %vm2316, %v2263, 0
        %v2324 = vsel %vm2316, %v2264, 0
        %v2327 = vsel %vm2316, %v2265, 0
        %2329 = vmatprep.subr.mxu0 %v2267
        %2330 = vmatpush1.msra.mxu0 %v2266
        %2331 = vmatprep.subr.mxu0 %v2269
        %2332 = vmatpush1.msra.mxu0 %v2268
        %2333 = vmatprep.subr.mxu0 %v2271
        %2334 = vmatpush1.msra.mxu0 %v2270
        %2335 = vmatprep.subr.mxu0 %v2273
        %2336 = vmatpush1.msra.mxu0 %v2272
        %2337 = vmatprep.subr.mxu0 %v2275
        %2338 = vmatpush1.msra.mxu0 %v2274
        %2339 = vmatprep.subr.mxu0 %v2277
        %2340 = vmatpush1.msra.mxu0 %v2276
        %2341 = vmatprep.subr.mxu0 %v2279
        %2342 = vmatpush1.msra.mxu0 %v2278
        %2343 = vmatprep.subr.mxu0 %v2281
        %2344 = vmatpush1.msra.mxu0 %v2280
        %2345 = vmatprep.subr.mxu0 %v2283
        %2346 = vmatpush1.msra.mxu0 %v2282
        %2347 = vmatprep.subr.mxu0 %v2285
        %2348 = vmatpush1.msra.mxu0 %v2284
        %2349 = vmatprep.subr.mxu0 %v2287
        %2350 = vmatpush1.msra.mxu0 %v2286
        %2351 = vmatprep.subr.mxu0 %v2289
        %2352 = vmatpush1.msra.mxu0 %v2288
        %2353 = vmatprep.subr.mxu0 %v2291
        %2354 = vmatpush1.msra.mxu0 %v2290
        %2355 = vmatprep.subr.mxu0 0.0
        %2356 = vmatpush1.msra.mxu0 0.0
        %2357 = vmatprep.subr.mxu0 0.0
        %2358 = vmatpush1.msra.mxu0 0.0
        %2359 = vmatprep.subr.mxu0 0.0
        %2360 = vmatpush1.msra.mxu0 0.0
        %2361 = vmatprep.subr.mxu0 0.0
        %2362 = vmatpush1.msra.mxu0 0.0
        %2363 = vmatprep.subr.mxu0 0.0
        %2364 = vmatpush1.msra.mxu0 0.0
        %2365 = vmatprep.subr.mxu0 0.0
        %2366 = vmatpush1.msra.mxu0 0.0
        %2367 = vmatprep.subr.mxu0 0.0
        %2368 = vmatpush1.msra.mxu0 0.0
        %2369 = vmatprep.subr.mxu0 0.0
        %2370 = vmatpush1.msra.mxu0 0.0
        %2371 = vmatprep.subr.mxu0 0.0
        %2372 = vmatpush1.msra.mxu0 0.0
        %2373 = vmatprep.subr.mxu0 0.0
        %2374 = vmatpush1.msra.mxu0 0.0
        %2375 = vmatprep.subr.mxu0 0.0
        %2376 = vmatpush1.msra.mxu0 0.0
        %2377 = vmatprep.subr.mxu0 0.0
        %2378 = vmatpush1.msra.mxu0 0.0
        %2379 = vmatprep.subr.mxu0 0.0
        %2380 = vmatpush1.msra.mxu0 0.0
        %2381 = vmatprep.subr.mxu0 0.0
        %2382 = vmatpush1.msra.mxu0 0.0
        %2383 = vmatprep.subr.mxu0 0.0
        %2384 = vmatpush1.msra.mxu0 0.0
        %2385 = vmatprep.subr.mxu0 0.0
        %2386 = vmatpush1.msra.mxu0 0.0
        %2387 = vmatprep.subr.mxu0 0.0
        %2388 = vmatpush1.msra.mxu0 0.0
        %2389 = vmatprep.subr.mxu0 0.0
        %2390 = vmatpush1.msra.mxu0 0.0
        %2391 = vmatprep.subr.mxu0 0.0
        %2392 = vmatpush1.msra.mxu0 0.0
        %2393 = vmatprep.mubr.f32.mxu0 0.0
        %2394 = vmatmul.mubr.f32.gmra.mrb[0].mxu0 %v2318
        %v2395 = vpop.f32.mrb[0].mxu0
        %v2396 = vadd.f32 %v2299, %v2395
        %v2397 = vpop.f32.mrb[0].mxu0
        %v2398 = vadd.f32 %v2299, %v2397
        %2399 = vmatprep.mubr.f32.mxu0 0.0
        %2400 = vmatmul.mubr.f32.gmra.mrb[0].mxu0 %v2321
        %v2401 = vpop.f32.mrb[0].mxu0
        %v2402 = vadd.f32 %v2304, %v2401
        %v2403 = vpop.f32.mrb[0].mxu0
        %v2404 = vadd.f32 %v2304, %v2403
        %2405 = vmatprep.mubr.f32.mxu0 0.0
        %2406 = vmatmul.mubr.f32.gmra.mrb[0].mxu0 %v2324
        %v2407 = vpop.f32.mrb[0].mxu0
        %v2408 = vadd.f32 %v2309, %v2407
        %v2409 = vpop.f32.mrb[0].mxu0
        %v2410 = vadd.f32 %v2309, %v2409
        %2411 = vmatprep.mubr.f32.mxu0 0.0
        %2412 = vmatmul.mubr.f32.gmra.mrb[0].mxu0 %v2327
        %v2413 = vpop.f32.mrb[0].mxu0
        %v2414 = vadd.f32 %v2314, %v2413
        %v2415 = vpop.f32.mrb[0].mxu0
        %v2416 = vadd.f32 %v2314, %v2415
        %2417 = vdwg.mxu0
        %v2418 = vxor.u32 %v2396, 2147483648
        %v2419 = vxor.u32 %v2398, 2147483648
        %v2420 = vxor.u32 %v2402, 2147483648
        %v2421 = vxor.u32 %v2404, 2147483648
        %v2422 = vxor.u32 %v2408, 2147483648
        %v2423 = vxor.u32 %v2410, 2147483648
        %v2424 = vxor.u32 %v2414, 2147483648
        %v2425 = vxor.u32 %v2416, 2147483648
        %v2426 = vmul.f32 %v2418, 1.442695
        %v2427 = vpow.pop %v2426
        %v2428 = vmul.f32 %v2419, 1.442695
        %v2429 = vpow.pop %v2428
        %v2430 = vmul.f32 %v2420, 1.442695
        %v2431 = vpow.pop %v2430
        %v2432 = vmul.f32 %v2421, 1.442695
        %v2433 = vpow.pop %v2432
        %v2434 = vmul.f32 %v2422, 1.442695
        %v2435 = vpow.pop %v2434
        %v2436 = vmul.f32 %v2423, 1.442695
        %v2437 = vpow.pop %v2436
        %v2438 = vmul.f32 %v2424, 1.442695
        %v2439 = vpow.pop %v2438
        %v2440 = vmul.f32 %v2425, 1.442695
        %v2441 = vpow.pop %v2440
        %v2442 = vadd.f32 %v2427, 1.0
        %v2443 = vadd.f32 %v2429, 1.0
        %v2444 = vadd.f32 %v2431, 1.0
        %v2445 = vadd.f32 %v2433, 1.0
        %v2446 = vadd.f32 %v2435, 1.0
        %v2447 = vadd.f32 %v2437, 1.0
        %v2448 = vadd.f32 %v2439, 1.0
        %v2449 = vadd.f32 %v2441, 1.0
        %v2450 = vrcp.pop %v2442
        %v2451 = vmul.f32 1.0, %v2450
        %v2452 = vrcp.pop %v2443
        %v2453 = vmul.f32 1.0, %v2452
        %v2454 = vrcp.pop %v2444
        %v2455 = vmul.f32 1.0, %v2454
        %v2456 = vrcp.pop %v2445
        %v2457 = vmul.f32 1.0, %v2456
        %v2458 = vrcp.pop %v2446
        %v2459 = vmul.f32 1.0, %v2458
        %v2460 = vrcp.pop %v2447
        %v2461 = vmul.f32 1.0, %v2460
        %v2462 = vrcp.pop %v2448
        %v2463 = vmul.f32 1.0, %v2462
        %v2464 = vrcp.pop %v2449
        %v2465 = vmul.f32 1.0, %v2464
        %v2466 = vld [vmem:[#allocation9] sm:$0xff]
        %v2467 = vld [vmem:[#allocation9 + $0x8] sm:$0xff]
        %v2468 = vld [vmem:[#allocation9 + $0x10] sm:$0xff]
        %v2469 = vld [vmem:[#allocation9 + $0x18] sm:$0xff]
        %2471 = vset.pattern.permute.xlu0 0
        %2472 = vperm.xlu0 %2471, %v806
        %v2473 = vpop.permute.xlu0 %2472
        %2476 = vset.pattern.permute.xlu0 0
        %2477 = vperm.xlu0 %2476, %v811
        %v2478 = vpop.permute.xlu0 %2477
        %2481 = vset.pattern.permute.xlu0 0
        %2482 = vperm.xlu0 %2481, %v816
        %v2483 = vpop.permute.xlu0 %2482
        %2486 = vset.pattern.permute.xlu0 0
        %2487 = vperm.xlu0 %2486, %v821
        %v2488 = vpop.permute.xlu0 %2487
        %v2491 = vsel %vm482, %v2466, 0
        %v2494 = vsel %vm482, %v2467, 0
        %v2497 = vsel %vm482, %v2468, 0
        %v2500 = vsel %vm482, %v2469, 0
        %2502 = vmatprep.subr.mxu0 %v2453
        %2503 = vmatpush1.msra.mxu0 %v2451
        %2504 = vmatprep.subr.mxu0 %v2457
        %2505 = vmatpush1.msra.mxu0 %v2455
        %2506 = vmatprep.subr.mxu0 %v2461
        %2507 = vmatpush1.msra.mxu0 %v2459
        %2508 = vmatprep.subr.mxu0 %v2465
        %2509 = vmatpush1.msra.mxu0 %v2463
        %2510 = vmatprep.subr.mxu0 0.0
        %2511 = vmatpush1.msra.mxu0 0.0
        %2512 = vmatprep.subr.mxu0 0.0
        %2513 = vmatpush1.msra.mxu0 0.0
        %2514 = vmatprep.subr.mxu0 0.0
        %2515 = vmatpush1.msra.mxu0 0.0
        %2516 = vmatprep.subr.mxu0 0.0
        %2517 = vmatpush1.msra.mxu0 0.0
        %2518 = vmatprep.subr.mxu0 0.0
        %2519 = vmatpush1.msra.mxu0 0.0
        %2520 = vmatprep.subr.mxu0 0.0
        %2521 = vmatpush1.msra.mxu0 0.0
        %2522 = vmatprep.subr.mxu0 0.0
        %2523 = vmatpush1.msra.mxu0 0.0
        %2524 = vmatprep.subr.mxu0 0.0
        %2525 = vmatpush1.msra.mxu0 0.0
        %2526 = vmatprep.subr.mxu0 0.0
        %2527 = vmatpush1.msra.mxu0 0.0
        %2528 = vmatprep.subr.mxu0 0.0
        %2529 = vmatpush1.msra.mxu0 0.0
        %2530 = vmatprep.subr.mxu0 0.0
        %2531 = vmatpush1.msra.mxu0 0.0
        %2532 = vmatprep.subr.mxu0 0.0
        %2533 = vmatpush1.msra.mxu0 0.0
        %2534 = vmatprep.subr.mxu0 0.0
        %2535 = vmatpush1.msra.mxu0 0.0
        %2536 = vmatprep.subr.mxu0 0.0
        %2537 = vmatpush1.msra.mxu0 0.0
        %2538 = vmatprep.subr.mxu0 0.0
        %2539 = vmatpush1.msra.mxu0 0.0
        %2540 = vmatprep.subr.mxu0 0.0
        %2541 = vmatpush1.msra.mxu0 0.0
        %2542 = vmatprep.subr.mxu0 0.0
        %2543 = vmatpush1.msra.mxu0 0.0
        %2544 = vmatprep.subr.mxu0 0.0
        %2545 = vmatpush1.msra.mxu0 0.0
        %2546 = vmatprep.subr.mxu0 0.0
        %2547 = vmatpush1.msra.mxu0 0.0
        %2548 = vmatprep.subr.mxu0 0.0
        %2549 = vmatpush1.msra.mxu0 0.0
        %2550 = vmatprep.subr.mxu0 0.0
        %2551 = vmatpush1.msra.mxu0 0.0
        %2552 = vmatprep.subr.mxu0 0.0
        %2553 = vmatpush1.msra.mxu0 0.0
        %2554 = vmatprep.subr.mxu0 0.0
        %2555 = vmatpush1.msra.mxu0 0.0
        %2556 = vmatprep.subr.mxu0 0.0
        %2557 = vmatpush1.msra.mxu0 0.0
        %2558 = vmatprep.subr.mxu0 0.0
        %2559 = vmatpush1.msra.mxu0 0.0
        %2560 = vmatprep.subr.mxu0 0.0
        %2561 = vmatpush1.msra.mxu0 0.0
        %2562 = vmatprep.subr.mxu0 0.0
        %2563 = vmatpush1.msra.mxu0 0.0
        %2564 = vmatprep.subr.mxu0 0.0
        %2565 = vmatpush1.msra.mxu0 0.0
        %2566 = vmatprep.mubr.f32.mxu0 0.0
        %2567 = vmatmul.mubr.f32.gmra.mrb[0].mxu0 %v2491
        %v2568 = vpop.f32.mrb[0].mxu0
        %v2569 = vadd.f32 %v2473, %v2568
        %v2570 = vpop.f32.mrb[0].mxu0
        %v2571 = vadd.f32 %v2473, %v2570
        %2572 = vmatprep.mubr.f32.mxu0 0.0
        %2573 = vmatmul.mubr.f32.gmra.mrb[0].mxu0 %v2494
        %v2574 = vpop.f32.mrb[0].mxu0
        %v2575 = vadd.f32 %v2478, %v2574
        %v2576 = vpop.f32.mrb[0].mxu0
        %v2577 = vadd.f32 %v2478, %v2576
        %2578 = vmatprep.mubr.f32.mxu0 0.0
        %2579 = vmatmul.mubr.f32.gmra.mrb[0].mxu0 %v2497
        %v2580 = vpop.f32.mrb[0].mxu0
        %v2581 = vadd.f32 %v2483, %v2580
        %v2582 = vpop.f32.mrb[0].mxu0
        %v2583 = vadd.f32 %v2483, %v2582
        %2584 = vmatprep.mubr.f32.mxu0 0.0
        %2585 = vmatmul.mubr.f32.gmra.mrb[0].mxu0 %v2500
        %v2586 = vpop.f32.mrb[0].mxu0
        %v2587 = vadd.f32 %v2488, %v2586
        %v2588 = vpop.f32.mrb[0].mxu0
        %v2589 = vadd.f32 %v2488, %v2588
        %2590 = vdwg.mxu0
        %v2591 = vld [vmem:[%s10] sm:$0xff]
        %v2592 = vld [vmem:[%s10 + $0x8] sm:$0xff]
        %v2593 = vld [vmem:[%s10 + $0x10] sm:$0xff]
        %v2594 = vld [vmem:[%s10 + $0x18] sm:$0xff]
        %2596 = vset.pattern.permute.xlu0 0
        %2597 = vperm.xlu0 %2596, %v2591
        %v2598 = vpop.permute.xlu0 %2597
        %2601 = vset.pattern.permute.xlu0 0
        %2602 = vperm.xlu0 %2601, %v2592
        %v2603 = vpop.permute.xlu0 %2602
        %2606 = vset.pattern.permute.xlu0 0
        %2607 = vperm.xlu0 %2606, %v2593
        %v2608 = vpop.permute.xlu0 %2607
        %2611 = vset.pattern.permute.xlu0 0
        %2612 = vperm.xlu0 %2611, %v2594
        %v2613 = vpop.permute.xlu0 %2612
        %v2615 = vadd.f32 %v2569, %v2598
        %v2616 = vadd.f32 %v2571, %v2598
        %v2617 = vadd.f32 %v2575, %v2603
        %v2618 = vadd.f32 %v2577, %v2603
        %v2619 = vadd.f32 %v2581, %v2608
        %v2620 = vadd.f32 %v2583, %v2608
        %v2621 = vadd.f32 %v2587, %v2613
        %v2622 = vadd.f32 %v2589, %v2613
        %v2623 = vxor.u32 %v2615, 2147483648
        %v2624 = vxor.u32 %v2616, 2147483648
        %v2625 = vxor.u32 %v2617, 2147483648
        %v2626 = vxor.u32 %v2618, 2147483648
        %v2627 = vxor.u32 %v2619, 2147483648
        %v2628 = vxor.u32 %v2620, 2147483648
        %v2629 = vxor.u32 %v2621, 2147483648
        %v2630 = vxor.u32 %v2622, 2147483648
        %v2631 = vmul.f32 %v2623, 1.442695
        %v2632 = vpow.pop %v2631
        %v2633 = vmul.f32 %v2624, 1.442695
        %v2634 = vpow.pop %v2633
        %v2635 = vmul.f32 %v2625, 1.442695
        %v2636 = vpow.pop %v2635
        %v2637 = vmul.f32 %v2626, 1.442695
        %v2638 = vpow.pop %v2637
        %v2639 = vmul.f32 %v2627, 1.442695
        %v2640 = vpow.pop %v2639
        %v2641 = vmul.f32 %v2628, 1.442695
        %v2642 = vpow.pop %v2641
        %v2643 = vmul.f32 %v2629, 1.442695
        %v2644 = vpow.pop %v2643
        %v2645 = vmul.f32 %v2630, 1.442695
        %v2646 = vpow.pop %v2645
        %v2647 = vadd.f32 %v2632, 1.0
        %v2648 = vadd.f32 %v2634, 1.0
        %v2649 = vadd.f32 %v2636, 1.0
        %v2650 = vadd.f32 %v2638, 1.0
        %v2651 = vadd.f32 %v2640, 1.0
        %v2652 = vadd.f32 %v2642, 1.0
        %v2653 = vadd.f32 %v2644, 1.0
        %v2654 = vadd.f32 %v2646, 1.0
        %v2655 = vrcp.pop %v2647
        %v2656 = vmul.f32 1.0, %v2655
        %v2657 = vrcp.pop %v2648
        %v2658 = vmul.f32 1.0, %v2657
        %v2659 = vrcp.pop %v2649
        %v2660 = vmul.f32 1.0, %v2659
        %v2661 = vrcp.pop %v2650
        %v2662 = vmul.f32 1.0, %v2661
        %v2663 = vrcp.pop %v2651
        %v2664 = vmul.f32 1.0, %v2663
        %v2665 = vrcp.pop %v2652
        %v2666 = vmul.f32 1.0, %v2665
        %v2667 = vrcp.pop %v2653
        %v2668 = vmul.f32 1.0, %v2667
        %v2669 = vrcp.pop %v2654
        %v2670 = vmul.f32 1.0, %v2669
        %v2671 = vmul.f32 %v2656, %v716
        %v2672 = vmul.f32 %v2658, %v716
        %v2673 = vmul.f32 %v2660, %v718
        %v2674 = vmul.f32 %v2662, %v718
        %v2675 = vmul.f32 %v2664, %v720
        %v2676 = vmul.f32 %v2666, %v720
        %v2677 = vmul.f32 %v2668, %v722
        %v2678 = vmul.f32 %v2670, %v722
        %v2679 = vmul.f32 %v2671, %v2451
        %v2680 = vmul.f32 %v2672, %v2453
        %v2681 = vmul.f32 %v2673, %v2455
        %v2682 = vmul.f32 %v2674, %v2457
        %v2683 = vmul.f32 %v2675, %v2459
        %v2684 = vmul.f32 %v2676, %v2461
        %v2685 = vmul.f32 %v2677, %v2463
        %v2686 = vmul.f32 %v2678, %v2465
        %v2687 = vadd.f32 %v2679, %v429
        %v2688 = vadd.f32 %v2680, %v430
        %v2689 = vadd.f32 %v2681, %v431
        %v2690 = vadd.f32 %v2682, %v432
        %v2691 = vadd.f32 %v2683, %v433
        %v2692 = vadd.f32 %v2684, %v434
        %v2693 = vadd.f32 %v2685, %v435
        %v2694 = vadd.f32 %v2686, %v436
        %2695 = vst [vmem:[%s423] sm:$0xff] %v2687
        %2696 = vst [vmem:[%s423 + $0x8] sm:$0xff] %v2688
        %2697 = vst [vmem:[%s423 + $0x10] sm:$0xff] %v2689
        %2698 = vst [vmem:[%s423 + $0x18] sm:$0xff] %v2690
        %2699 = vst [vmem:[%s423 + $0x20] sm:$0xff] %v2691
        %2700 = vst [vmem:[%s423 + $0x28] sm:$0xff] %v2692
        %2701 = vst [vmem:[%s423 + $0x30] sm:$0xff] %v2693
        %2702 = vst [vmem:[%s423 + $0x38] sm:$0xff] %v2694
        %s2703 = sand.u32 %s271, 1
        %s2704 = scalar_lea.sflag [#allocation6], %s2703
        %s2705 = sand.u32 %s271, 1
        %s2706 = smul.addr %s2705, 64
        %s2707 = scalar_lea.vmem [#allocation10], %s2706
        // Predicated region
        $region77: #{tpu_custom_call.1} parent=63 // pred_check
          %p2708 = pneg %p281
        $region78: #{tpu_custom_call.1} parent=63 // pred_check_branch
          %2710 = sbr.rel (%p2708) target = $region80
        $region79: #{tpu_custom_call.1} parent=63 // pred_region
          %s2712 = ssub.s32 1024, 1024
          %2713 = vsyncadd %s2704, %s2712
          %s2714 = smul.addr %s27, 8
          %s2715 = smul.addr %s2714, 128
          %s2716 = scalar_lea.hbm %s11, %s2715
          %s2717 = sshll.u32 %s2707, 4
          %s2718 = int_to_ptr.vmem [resolvable:$true] %s2717
          %2723 = dma.vmem_to_hbm [thread:$0]  %s2718, 1024, %s2716, %s2704, 256, 256, 16
        $region80: #{tpu_custom_call.1} parent=63 // pred_fallthru
          _
      $region64: #{tpu_custom_call.1} parent=5 // pred_fallthru
        _
      %p2724 = scmp.le.s32.totalorder 2, %s22
      // Predicated region
      $region81: #{tpu_custom_call.1} parent=5 // pred_check
        %p2725 = pneg %p2724
      $region82: #{tpu_custom_call.1} parent=5 // pred_check_branch
        %2727 = sbr.rel (%p2725) target = $region84
      $region83: #{tpu_custom_call.1} parent=5 // pred_region
        %s2728 = ssub.s32 %s22, 2
        // Predicated region
        $region85: #{tpu_custom_call.1} parent=83 // pred_check
          %p2729 = pneg %p287
        $region86: #{tpu_custom_call.1} parent=83 // pred_check_branch
          %2731 = sbr.rel (%p2729) target = $region88
        $region87: #{tpu_custom_call.1} parent=83 // pred_region
          %s2732 = sand.u32 %s272, 1
          %s2733 = scalar_lea.sflag [#allocation6], %s2732
          %s2734 = sand.u32 %s272, 1
          %s2735 = smul.addr %s2734, 64
          %s2736 = scalar_lea.vmem [#allocation10], %s2735
          %2737 = dma.done %s2733, 1024
        $region88: #{tpu_custom_call.1} parent=83 // pred_fallthru
          _
      $region84: #{tpu_custom_call.1} parent=5 // pred_fallthru
        _
    $region6: #{tpu_custom_call.1} parent=1 // loop_footer
      %s26 = sadd.s32 1, %s22
    $region7: #{tpu_custom_call.1} parent=1 // loop_footer_branch
      %21 = sbr.rel target = $region3
    $region8: #{tpu_custom_call.1} parent=1 // loop_exit
      _
    %2738 = vsyncpa [#allocation5], 1
    %s2739 = scalar_lea.sflag [#allocation5], 1
    %2740 = vsyncpa %s2739, 1
    %2741 = vsyncpa [#allocation8], 1
    %2742 = vsyncpa [#allocation6], 1
    %s2743 = scalar_lea.sflag [#allocation6], 1
    %2744 = vsyncpa %s2743, 1

</llo_original>
